<compile_context>
chip_gen: v7x
topology: tpu7x:2x2x1
jax: 0.10.0
libtpu: 0.0.40
codegen_flags: <defaults>
</compile_context>

<pallas_src>
import functools

import jax
import jax.numpy as jnp
from jax.experimental import pallas as pl
from jax.experimental.pallas import tpu as pltpu


# --------------------------------------------------------------------------------------
# Kernel
# --------------------------------------------------------------------------------------
def _stats_kernel(la_ref, lb_ref, lab_ref, stats_ref, acc_ref, *,
                  s_total, ts, t_per, masked):
    """Accumulate per-class [tpA, fpA, fnA, ceA, tpB, fpB, fnB, ceB] into acc (C, 128).

    Flushes to the (1, C, 128) output block only on the final (batch, tile) step.
    """
    bi = pl.program_id(1)
    ti = pl.program_id(2)

    @pl.when((bi == 0) & (ti == 0))
    def _():
        acc_ref[...] = jnp.zeros_like(acc_ref)

    c = la_ref.shape[1]

    labels = lab_ref[0].astype(jnp.int32)                       # (1, TS)
    cls = jax.lax.broadcasted_iota(jnp.int32, (c, ts), 0)       # class index on sublanes
    onehot = cls == labels                                      # (C, TS) bool

    if masked:
        # Ragged tail: mask out-of-bounds lanes (garbage data from the OOB block read).
        tile_start = (pl.program_id(0) * t_per + ti) * ts
        lane = jax.lax.broadcasted_iota(jnp.int32, (1, ts), 1)
        valid = (tile_start + lane) < s_total                   # (1, TS) bool
        onehot = jnp.logical_and(onehot, valid)
        valid_f = valid.astype(jnp.float32)

    onehot_f = onehot.astype(jnp.float32)
    count = jnp.sum(onehot_f, axis=-1, keepdims=True)           # (C, 1) label counts

    def per_pred(logits_ref):
        x = logits_ref[0].astype(jnp.float32)                   # (C, TS)
        if masked:
            x = jnp.where(valid, x, 0.0)                        # kill NaN/inf in OOB lanes
        m = jnp.max(x, axis=0, keepdims=True)                   # (1, TS) sublane max
        e = jnp.exp(x - m)
        ssum = jnp.sum(e, axis=0, keepdims=True)                # (1, TS)
        inv = pl.reciprocal(ssum, approx=True)                  # EUP
        inv = inv * (2.0 - ssum * inv)                          # one Newton step -> ~exact
        p = e * inv                                             # softmax probabilities

        tp = jnp.sum(p * onehot_f, axis=-1, keepdims=True)      # (C, 1)
        if masked:
            psum = jnp.sum(p * valid_f, axis=-1, keepdims=True)
        else:
            psum = jnp.sum(p, axis=-1, keepdims=True)
        fp = psum - tp                                          # sum(p*(1-y)) = sum(p) - tp
        fn = count - tp                                         # sum((1-p)*y) = count - tp

        lse = jnp.log(ssum) + m                                 # (1, TS) log-sum-exp
        ce = (jnp.sum(onehot_f * lse, axis=-1, keepdims=True)
              - jnp.sum(onehot_f * x, axis=-1, keepdims=True))  # per-class -log p_label sum
        return tp, fp, fn, ce

    pieces = per_pred(la_ref) + per_pred(lb_ref)                # 8 x (C, 1)

    # Place the eight (C, 1) stats into columns 0..7 of a (C, 128) update (single-vreg ops).
    col = jax.lax.broadcasted_iota(jnp.int32, (c, 128), 1)
    upd = jnp.zeros((c, 128), jnp.float32)
    for k, piece in enumerate(pieces):
        upd = upd + jnp.where(col == k, piece, 0.0)
    acc_ref[...] = acc_ref[...] + upd

    @pl.when((bi == pl.num_programs(1) - 1) & (ti == pl.num_programs(2) - 1))
    def _():
        stats_ref[0] = acc_ref[...]                             # lane-dense 128-wide flush


# --------------------------------------------------------------------------------------
# Tiling / VMEM budget
# --------------------------------------------------------------------------------------
_TS_CANDIDATES = (65536, 32768, 16384, 8192, 4096, 2048, 1024, 512, 256, 128)
_N_TEMPS = 6  # approx. number of live (C, TS) f32 temporaries inside the kernel


def _vmem_need_bytes(ts, c, pred_itemsize, lab_itemsize):
    in_bufs = 2 * 2 * c * ts * pred_itemsize     # two logits streams, double-buffered
    lab_bufs = 2 * ts * lab_itemsize             # label stream, double-buffered
    temps = _N_TEMPS * c * ts * 4                # f32 temporaries
    return in_bufs + lab_bufs + temps


def _pick_tiling(s, c, pred_itemsize, lab_itemsize):
    """Pick lane-tile TS (multiple of 128), 2-way split when possible, and a VMEM budget."""
    s128 = -(-s // 128) * 128
    budget = 20 << 20                            # keep buffers + temps under ~20 MiB
    ts = 128
    for cand in _TS_CANDIDATES:
        if _vmem_need_bytes(cand, c, pred_itemsize, lab_itemsize) <= budget:
            ts = cand
            break
    ts = min(ts, s128)
    # Prefer an exact divisor of S (skips the in-kernel tail mask) if it costs < 2x tile size.
    if s % ts != 0:
        for cand in _TS_CANDIDATES:
            if cand < ts and 2 * cand >= ts and s % cand == 0:
                ts = cand
                break
    n_tiles = -(-s // ts)
    n_split = 2 if (n_tiles % 2 == 0 and n_tiles >= 2) else 1
    need = _vmem_need_bytes(ts, c, pred_itemsize, lab_itemsize)
    vmem_limit = int(min(max(need + (8 << 20), 32 << 20), 56 << 20))
    return ts, n_split, vmem_limit


# --------------------------------------------------------------------------------------
# pallas_call wrapper
# --------------------------------------------------------------------------------------
def _dc_ce_stats(la, lb, labels, *, ts, n_split, s_total, vmem_limit):
    b, c, _ = la.shape
    n_tiles = -(-s_total // ts)
    t_per = n_tiles // n_split
    masked = (s_total % ts) != 0
    grid = (n_split, b, t_per)

    kernel = functools.partial(_stats_kernel, s_total=s_total, ts=ts,
                               t_per=t_per, masked=masked)

    pred_itemsize = jnp.dtype(la.dtype).itemsize
    lab_itemsize = jnp.dtype(labels.dtype).itemsize
    cost = pl.CostEstimate(
        flops=int(2 * 15 * c * b * s_total),
        transcendentals=int(2 * (c + 1) * b * s_total),
        bytes_accessed=int((2 * c * pred_itemsize + lab_itemsize) * b * s_total
                           + n_split * c * 128 * 4),
    )

    stats = pl.pallas_call(
        kernel,
        out_shape=jax.ShapeDtypeStruct((n_split, c, 128), jnp.float32),
        grid_spec=pltpu.PrefetchScalarGridSpec(
            num_scalar_prefetch=0,
            grid=grid,
            in_specs=[
                pl.BlockSpec((1, c, ts), lambda p, bi, t: (bi, 0, p * t_per + t)),
                pl.BlockSpec((1, c, ts), lambda p, bi, t: (bi, 0, p * t_per + t)),
                pl.BlockSpec((1, 1, ts), lambda p, bi, t: (bi, 0, p * t_per + t)),
            ],
            out_specs=pl.BlockSpec((1, c, 128), lambda p, bi, t: (p, 0, 0)),
            scratch_shapes=[pltpu.VMEM((c, 128), jnp.float32)],
        ),
        compiler_params=pltpu.CompilerParams(
            dimension_semantics=("parallel", "arbitrary", "arbitrary"),
            vmem_limit_bytes=vmem_limit,
        ),
        cost_estimate=cost,
    )(la, lb, labels)
    return jnp.sum(stats, axis=0)                               # (C, 128)


@jax.jit
def loss_forward(pred_a, pred_b, gt_mask):
    """Loss.forward: 0.5 * DC_and_CE(pred_A, gt) + DC_and_CE(pred_B, gt)."""
    b, c = pred_a.shape[0], pred_a.shape[1]
    s = 1
    for d in pred_a.shape[2:]:
        s *= d

    # Pure reshapes on the native NCDHW layout: no transpose / cast / pad copies.
    la = pred_a.reshape(b, c, s)
    lb = pred_b.reshape(b, c, s)
    labels = gt_mask.reshape(b, 1, s)           # keep native dtype; cast in-kernel

    ts, n_split, vmem_limit = _pick_tiling(
        s, c, jnp.dtype(la.dtype).itemsize, jnp.dtype(labels.dtype).itemsize)

    stats = _dc_ce_stats(la, lb, labels, ts=ts, n_split=n_split,
                         s_total=s, vmem_limit=vmem_limit)

    n_vox = b * s
    smooth = 1.0

    def dc_ce(tp, fp, fn, ce):
        dc = (2.0 * tp + smooth) / (2.0 * tp + fp + fn + smooth)   # per class (do_bg=True)
        return -jnp.mean(dc) + jnp.sum(ce) / n_vox                 # batch_dice + CE mean

    loss_a = dc_ce(stats[:, 0], stats[:, 1], stats[:, 2], stats[:, 3])
    loss_b = dc_ce(stats[:, 4], stats[:, 5], stats[:, 6], stats[:, 7])
    return 0.5 * loss_a + loss_b


# --------------------------------------------------------------------------------------
# Pure-JAX reference of the same math (verification)
# --------------------------------------------------------------------------------------
def _reference_loss(pred_a, pred_b, gt_mask):
    def single(pred):
        c = pred.shape[1]
        perm = (0,) + tuple(range(2, pred.ndim)) + (1,)
        logits = jnp.transpose(pred, perm).reshape(-1, c).astype(jnp.float32)
        labels = gt_mask[:, 0].reshape(-1).astype(jnp.int32)
        p = jax.nn.softmax(logits, axis=-1)
        logp = jax.nn.log_softmax(logits, axis=-1)
        onehot = jax.nn.one_hot(labels, c, dtype=jnp.float32)
        tp = jnp.sum(p * onehot, axis=0)
        fp = jnp.sum(p * (1 - onehot), axis=0)
        fn = jnp.sum((1 - p) * onehot, axis=0)
        dc = (2 * tp + 1.0) / (2 * tp + fp + fn + 1.0)
        dc_loss = -jnp.mean(dc)
        ce_loss = -jnp.mean(jnp.sum(logp * onehot, axis=-1))
        return dc_loss + ce_loss

    return 0.5 * single(pred_a) + single(pred_b)


if __name__ == "__main__":
    key = jax.random.PRNGKey(0)
    k1, k2, k3 = jax.random.split(key, 3)

    B, C, D, H, W = 2, 4, 8, 16, 16
    pred_a = jax.random.normal(k1, (B, C, D, H, W), jnp.float32)
    pred_b = jax.random.normal(k2, (B, C, D, H, W), jnp.float32)
    gt_mask = jax.random.randint(k3, (B, 1, D, H, W), 0, C).astype(jnp.int32)

    # module signature: forward(prediction, gt) with prediction=[pred_A, pred_B], gt=[gt_mask]
    out = loss_forward(pred_a, pred_b, gt_mask)
    out = jax.block_until_ready(out)

    ref = _reference_loss(pred_a, pred_b, gt_mask)
    if not jnp.allclose(out, ref, rtol=1e-4, atol=1e-5):
        raise AssertionError(f"mismatch: kernel={out} ref={ref}")

    print("KERNEL_OK")
</pallas_src>

<mosaic_0001>
module attributes {stable_mosaic.version = 11 : i64} {
  func.func @_stats_kernel(%arg0: i32, %arg1: i32, %arg2: i32, %arg3: memref<1x4x2048xf32, #tpu.memory_space<vmem>>, %arg4: memref<1x4x2048xf32, #tpu.memory_space<vmem>>, %arg5: memref<1x1x2048xi32, #tpu.memory_space<vmem>>, %arg6: memref<1x4x128xf32, #tpu.memory_space<vmem>>, %arg7: memref<4x128xf32, #tpu.memory_space<vmem>>) attributes {dimension_semantics = [#tpu.dimension_semantics<parallel>, #tpu.dimension_semantics<arbitrary>, #tpu.dimension_semantics<arbitrary>], iteration_bounds = array<i64: 1, 2, 1>, scalar_prefetch = 0 : i64, scratch_operands = 1 : i64, tpu.core_type = #tpu.core_type<tc>, window_params = [{transform_indices = @transform_0, window_bounds = array<i64: 1, 4, 2048>}, {transform_indices = @transform_1, window_bounds = array<i64: 1, 4, 2048>}, {transform_indices = @transform_2, window_bounds = array<i64: 1, 1, 2048>}, {transform_indices = @transform_3, window_bounds = array<i64: 1, 4, 128>}]} {
    %c0_i32 = arith.constant 0 : i32
    %0 = arith.cmpi eq, %arg1, %c0_i32 : i32
    %c0_i32_0 = arith.constant 0 : i32
    %1 = arith.cmpi eq, %arg2, %c0_i32_0 : i32
    %2 = arith.andi %0, %1 : i1
    %3 = arith.extui %2 : i1 to i32
    %c0_i32_1 = arith.constant 0 : i32
    %4 = arith.cmpi ne, %3, %c0_i32_1 : i32
    scf.if %4 {
      %cst_41 = arith.constant 0.000000e+00 : f32
      %146 = vector.broadcast %cst_41 : f32 to vector<4x128xf32>
      %c0_42 = arith.constant 0 : index
      %c0_43 = arith.constant 0 : index
      %147 = vector.load %arg7[%c0_42, %c0_43] : memref<4x128xf32, #tpu.memory_space<vmem>>, vector<4x128xf32>
      tpu.vector_store %arg7[%c0_42, %c0_43], %146 {strides = array<i32>} : memref<4x128xf32, #tpu.memory_space<vmem>>, vector<4x128xf32>,
    } else {
    }
    %c0 = arith.constant 0 : index
    %c0_2 = arith.constant 0 : index
    %c0_3 = arith.constant 0 : index
    %5 = vector.load %arg5[%c0, %c0_2, %c0_3] : memref<1x1x2048xi32, #tpu.memory_space<vmem>>, vector<1x1x2048xi32>
    %6 = vector.shape_cast %5 : vector<1x1x2048xi32> to vector<1x2048xi32>
    %7 = tpu.iota {dimensions = array<i32: 0>} : vector<4x2048xi32>
    %8 = vector.broadcast %6 : vector<1x2048xi32> to vector<4x2048xi32>
    %9 = arith.cmpi eq, %7, %8 : vector<4x2048xi32>
    %10 = arith.extui %9 : vector<4x2048xi1> to vector<4x2048xi32>
    %11 = arith.sitofp %10 : vector<4x2048xi32> to vector<4x2048xf32>
    %cst = arith.constant dense<0.000000e+00> : vector<4xf32>
    %12 = vector.multi_reduction <add>, %11, %cst [1] : vector<4x2048xf32> to vector<4xf32>
    %13 = vector.shape_cast %12 : vector<4xf32> to vector<4x1xf32>
    %c0_4 = arith.constant 0 : index
    %c0_5 = arith.constant 0 : index
    %c0_6 = arith.constant 0 : index
    %14 = vector.load %arg3[%c0_4, %c0_5, %c0_6] : memref<1x4x2048xf32, #tpu.memory_space<vmem>>, vector<1x4x2048xf32>
    %15 = vector.shape_cast %14 : vector<1x4x2048xf32> to vector<4x2048xf32>
    %cst_7 = arith.constant dense<0xFF800000> : vector<2048xf32>
    %16 = vector.multi_reduction <maximumf>, %15, %cst_7 [0] : vector<4x2048xf32> to vector<2048xf32>
    %17 = vector.shape_cast %16 : vector<2048xf32> to vector<1x2048xf32>
    %18 = vector.broadcast %17 : vector<1x2048xf32> to vector<4x2048xf32>
    %19 = arith.subf %15, %18 : vector<4x2048xf32>
    %20 = math.exp %19 : vector<4x2048xf32>
    %cst_8 = arith.constant dense<0.000000e+00> : vector<2048xf32>
    %21 = vector.multi_reduction <add>, %20, %cst_8 [0] : vector<4x2048xf32> to vector<2048xf32>
    %22 = vector.shape_cast %21 : vector<2048xf32> to vector<1x2048xf32>
    %23 = tpu.reciprocal %22 {approx = true} : vector<1x2048xf32> -> vector<1x2048xf32>
    %24 = arith.mulf %22, %23 : vector<1x2048xf32>
    %cst_9 = arith.constant 2.000000e+00 : f32
    %25 = vector.broadcast %cst_9 : f32 to vector<1x2048xf32>
    %26 = arith.subf %25, %24 : vector<1x2048xf32>
    %27 = arith.mulf %23, %26 : vector<1x2048xf32>
    %28 = vector.broadcast %27 : vector<1x2048xf32> to vector<4x2048xf32>
    %29 = arith.mulf %20, %28 : vector<4x2048xf32>
    %30 = arith.mulf %29, %11 : vector<4x2048xf32>
    %cst_10 = arith.constant dense<0.000000e+00> : vector<4xf32>
    %31 = vector.multi_reduction <add>, %30, %cst_10 [1] : vector<4x2048xf32> to vector<4xf32>
    %32 = vector.shape_cast %31 : vector<4xf32> to vector<4x1xf32>
    %cst_11 = arith.constant dense<0.000000e+00> : vector<4xf32>
    %33 = vector.multi_reduction <add>, %29, %cst_11 [1] : vector<4x2048xf32> to vector<4xf32>
    %34 = vector.shape_cast %33 : vector<4xf32> to vector<4x1xf32>
    %35 = arith.subf %34, %32 : vector<4x1xf32>
    %36 = arith.subf %13, %32 : vector<4x1xf32>
    %37 = math.log %22 : vector<1x2048xf32>
    %38 = arith.addf %37, %17 : vector<1x2048xf32>
    %39 = vector.broadcast %38 : vector<1x2048xf32> to vector<4x2048xf32>
    %40 = arith.mulf %11, %39 : vector<4x2048xf32>
    %cst_12 = arith.constant dense<0.000000e+00> : vector<4xf32>
    %41 = vector.multi_reduction <add>, %40, %cst_12 [1] : vector<4x2048xf32> to vector<4xf32>
    %42 = vector.shape_cast %41 : vector<4xf32> to vector<4x1xf32>
    %43 = arith.mulf %11, %15 : vector<4x2048xf32>
    %cst_13 = arith.constant dense<0.000000e+00> : vector<4xf32>
    %44 = vector.multi_reduction <add>, %43, %cst_13 [1] : vector<4x2048xf32> to vector<4xf32>
    %45 = vector.shape_cast %44 : vector<4xf32> to vector<4x1xf32>
    %46 = arith.subf %42, %45 : vector<4x1xf32>
    %c0_14 = arith.constant 0 : index
    %c0_15 = arith.constant 0 : index
    %c0_16 = arith.constant 0 : index
    %47 = vector.load %arg4[%c0_14, %c0_15, %c0_16] : memref<1x4x2048xf32, #tpu.memory_space<vmem>>, vector<1x4x2048xf32>
    %48 = vector.shape_cast %47 : vector<1x4x2048xf32> to vector<4x2048xf32>
    %cst_17 = arith.constant dense<0xFF800000> : vector<2048xf32>
    %49 = vector.multi_reduction <maximumf>, %48, %cst_17 [0] : vector<4x2048xf32> to vector<2048xf32>
    %50 = vector.shape_cast %49 : vector<2048xf32> to vector<1x2048xf32>
    %51 = vector.broadcast %50 : vector<1x2048xf32> to vector<4x2048xf32>
    %52 = arith.subf %48, %51 : vector<4x2048xf32>
    %53 = math.exp %52 : vector<4x2048xf32>
    %cst_18 = arith.constant dense<0.000000e+00> : vector<2048xf32>
    %54 = vector.multi_reduction <add>, %53, %cst_18 [0] : vector<4x2048xf32> to vector<2048xf32>
    %55 = vector.shape_cast %54 : vector<2048xf32> to vector<1x2048xf32>
    %56 = tpu.reciprocal %55 {approx = true} : vector<1x2048xf32> -> vector<1x2048xf32>
    %57 = arith.mulf %55, %56 : vector<1x2048xf32>
    %cst_19 = arith.constant 2.000000e+00 : f32
    %58 = vector.broadcast %cst_19 : f32 to vector<1x2048xf32>
    %59 = arith.subf %58, %57 : vector<1x2048xf32>
    %60 = arith.mulf %56, %59 : vector<1x2048xf32>
    %61 = vector.broadcast %60 : vector<1x2048xf32> to vector<4x2048xf32>
    %62 = arith.mulf %53, %61 : vector<4x2048xf32>
    %63 = arith.mulf %62, %11 : vector<4x2048xf32>
    %cst_20 = arith.constant dense<0.000000e+00> : vector<4xf32>
    %64 = vector.multi_reduction <add>, %63, %cst_20 [1] : vector<4x2048xf32> to vector<4xf32>
    %65 = vector.shape_cast %64 : vector<4xf32> to vector<4x1xf32>
    %cst_21 = arith.constant dense<0.000000e+00> : vector<4xf32>
    %66 = vector.multi_reduction <add>, %62, %cst_21 [1] : vector<4x2048xf32> to vector<4xf32>
    %67 = vector.shape_cast %66 : vector<4xf32> to vector<4x1xf32>
    %68 = arith.subf %67, %65 : vector<4x1xf32>
    %69 = arith.subf %13, %65 : vector<4x1xf32>
    %70 = math.log %55 : vector<1x2048xf32>
    %71 = arith.addf %70, %50 : vector<1x2048xf32>
    %72 = vector.broadcast %71 : vector<1x2048xf32> to vector<4x2048xf32>
    %73 = arith.mulf %11, %72 : vector<4x2048xf32>
    %cst_22 = arith.constant dense<0.000000e+00> : vector<4xf32>
    %74 = vector.multi_reduction <add>, %73, %cst_22 [1] : vector<4x2048xf32> to vector<4xf32>
    %75 = vector.shape_cast %74 : vector<4xf32> to vector<4x1xf32>
    %76 = arith.mulf %11, %48 : vector<4x2048xf32>
    %cst_23 = arith.constant dense<0.000000e+00> : vector<4xf32>
    %77 = vector.multi_reduction <add>, %76, %cst_23 [1] : vector<4x2048xf32> to vector<4xf32>
    %78 = vector.shape_cast %77 : vector<4xf32> to vector<4x1xf32>
    %79 = arith.subf %75, %78 : vector<4x1xf32>
    %80 = tpu.iota {dimensions = array<i32: 1>} : vector<4x128xi32>
    %cst_24 = arith.constant 0.000000e+00 : f32
    %81 = vector.broadcast %cst_24 : f32 to vector<4x128xf32>
    %c0_i32_25 = arith.constant 0 : i32
    %82 = vector.broadcast %c0_i32_25 : i32 to vector<4x128xi32>
    %83 = arith.cmpi eq, %80, %82 : vector<4x128xi32>
    %cst_26 = arith.constant 0.000000e+00 : f32
    %84 = vector.shape_cast %32 : vector<4x1xf32> to vector<4x1xf32>
    %85 = vector.broadcast %84 : vector<4x1xf32> to vector<4x128xf32>
    %86 = vector.broadcast %cst_26 : f32 to vector<4x128xf32>
    %87 = arith.select %83, %85, %86 : vector<4x128xi1>, vector<4x128xf32>
    %88 = arith.addf %81, %87 : vector<4x128xf32>
    %c1_i32 = arith.constant 1 : i32
    %89 = vector.broadcast %c1_i32 : i32 to vector<4x128xi32>
    %90 = arith.cmpi eq, %80, %89 : vector<4x128xi32>
    %cst_27 = arith.constant 0.000000e+00 : f32
    %91 = vector.shape_cast %35 : vector<4x1xf32> to vector<4x1xf32>
    %92 = vector.broadcast %91 : vector<4x1xf32> to vector<4x128xf32>
    %93 = vector.broadcast %cst_27 : f32 to vector<4x128xf32>
    %94 = arith.select %90, %92, %93 : vector<4x128xi1>, vector<4x128xf32>
    %95 = arith.addf %88, %94 : vector<4x128xf32>
    %c2_i32 = arith.constant 2 : i32
    %96 = vector.broadcast %c2_i32 : i32 to vector<4x128xi32>
    %97 = arith.cmpi eq, %80, %96 : vector<4x128xi32>
    %cst_28 = arith.constant 0.000000e+00 : f32
    %98 = vector.shape_cast %36 : vector<4x1xf32> to vector<4x1xf32>
    %99 = vector.broadcast %98 : vector<4x1xf32> to vector<4x128xf32>
    %100 = vector.broadcast %cst_28 : f32 to vector<4x128xf32>
    %101 = arith.select %97, %99, %100 : vector<4x128xi1>, vector<4x128xf32>
    %102 = arith.addf %95, %101 : vector<4x128xf32>
    %c3_i32 = arith.constant 3 : i32
    %103 = vector.broadcast %c3_i32 : i32 to vector<4x128xi32>
    %104 = arith.cmpi eq, %80, %103 : vector<4x128xi32>
    %cst_29 = arith.constant 0.000000e+00 : f32
    %105 = vector.shape_cast %46 : vector<4x1xf32> to vector<4x1xf32>
    %106 = vector.broadcast %105 : vector<4x1xf32> to vector<4x128xf32>
    %107 = vector.broadcast %cst_29 : f32 to vector<4x128xf32>
    %108 = arith.select %104, %106, %107 : vector<4x128xi1>, vector<4x128xf32>
    %109 = arith.addf %102, %108 : vector<4x128xf32>
    %c4_i32 = arith.constant 4 : i32
    %110 = vector.broadcast %c4_i32 : i32 to vector<4x128xi32>
    %111 = arith.cmpi eq, %80, %110 : vector<4x128xi32>
    %cst_30 = arith.constant 0.000000e+00 : f32
    %112 = vector.shape_cast %65 : vector<4x1xf32> to vector<4x1xf32>
    %113 = vector.broadcast %112 : vector<4x1xf32> to vector<4x128xf32>
    %114 = vector.broadcast %cst_30 : f32 to vector<4x128xf32>
    %115 = arith.select %111, %113, %114 : vector<4x128xi1>, vector<4x128xf32>
    %116 = arith.addf %109, %115 : vector<4x128xf32>
    %c5_i32 = arith.constant 5 : i32
    %117 = vector.broadcast %c5_i32 : i32 to vector<4x128xi32>
    %118 = arith.cmpi eq, %80, %117 : vector<4x128xi32>
    %cst_31 = arith.constant 0.000000e+00 : f32
    %119 = vector.shape_cast %68 : vector<4x1xf32> to vector<4x1xf32>
    %120 = vector.broadcast %119 : vector<4x1xf32> to vector<4x128xf32>
    %121 = vector.broadcast %cst_31 : f32 to vector<4x128xf32>
    %122 = arith.select %118, %120, %121 : vector<4x128xi1>, vector<4x128xf32>
    %123 = arith.addf %116, %122 : vector<4x128xf32>
    %c6_i32 = arith.constant 6 : i32
    %124 = vector.broadcast %c6_i32 : i32 to vector<4x128xi32>
    %125 = arith.cmpi eq, %80, %124 : vector<4x128xi32>
    %cst_32 = arith.constant 0.000000e+00 : f32
    %126 = vector.shape_cast %69 : vector<4x1xf32> to vector<4x1xf32>
    %127 = vector.broadcast %126 : vector<4x1xf32> to vector<4x128xf32>
    %128 = vector.broadcast %cst_32 : f32 to vector<4x128xf32>
    %129 = arith.select %125, %127, %128 : vector<4x128xi1>, vector<4x128xf32>
    %130 = arith.addf %123, %129 : vector<4x128xf32>
    %c7_i32 = arith.constant 7 : i32
    %131 = vector.broadcast %c7_i32 : i32 to vector<4x128xi32>
    %132 = arith.cmpi eq, %80, %131 : vector<4x128xi32>
    %cst_33 = arith.constant 0.000000e+00 : f32
    %133 = vector.shape_cast %79 : vector<4x1xf32> to vector<4x1xf32>
    %134 = vector.broadcast %133 : vector<4x1xf32> to vector<4x128xf32>
    %135 = vector.broadcast %cst_33 : f32 to vector<4x128xf32>
    %136 = arith.select %132, %134, %135 : vector<4x128xi1>, vector<4x128xf32>
    %137 = arith.addf %130, %136 : vector<4x128xf32>
    %c0_34 = arith.constant 0 : index
    %c0_35 = arith.constant 0 : index
    %138 = vector.load %arg7[%c0_34, %c0_35] : memref<4x128xf32, #tpu.memory_space<vmem>>, vector<4x128xf32>
    %139 = arith.addf %138, %137 : vector<4x128xf32>
    %c0_36 = arith.constant 0 : index
    %c0_37 = arith.constant 0 : index
    %140 = vector.load %arg7[%c0_36, %c0_37] : memref<4x128xf32, #tpu.memory_space<vmem>>, vector<4x128xf32>
    tpu.vector_store %arg7[%c0_36, %c0_37], %139 {strides = array<i32>} : memref<4x128xf32, #tpu.memory_space<vmem>>, vector<4x128xf32>,
    %c1_i32_38 = arith.constant 1 : i32
    %141 = arith.cmpi eq, %arg1, %c1_i32_38 : i32
    %c0_i32_39 = arith.constant 0 : i32
    %142 = arith.cmpi eq, %arg2, %c0_i32_39 : i32
    %143 = arith.andi %141, %142 : i1
    %144 = arith.extui %143 : i1 to i32
    %c0_i32_40 = arith.constant 0 : i32
    %145 = arith.cmpi ne, %144, %c0_i32_40 : i32
    scf.if %145 {
      %c0_41 = arith.constant 0 : index
      %c0_42 = arith.constant 0 : index
      %146 = vector.load %arg7[%c0_41, %c0_42] : memref<4x128xf32, #tpu.memory_space<vmem>>, vector<4x128xf32>
      %c0_43 = arith.constant 0 : index
      %c0_44 = arith.constant 0 : index
      %c0_45 = arith.constant 0 : index
      %147 = vector.load %arg6[%c0_43, %c0_44, %c0_45] : memref<1x4x128xf32, #tpu.memory_space<vmem>>, vector<1x4x128xf32>
      %148 = vector.shape_cast %147 : vector<1x4x128xf32> to vector<4x128xf32>
      %149 = vector.shape_cast %146 : vector<4x128xf32> to vector<1x4x128xf32>
      tpu.vector_store %arg6[%c0_43, %c0_44, %c0_45], %149 {strides = array<i32>} : memref<1x4x128xf32, #tpu.memory_space<vmem>>, vector<1x4x128xf32>,
    } else {
    }
    return
  }
  func.func @transform_0(%arg0: i32, %arg1: i32, %arg2: i32) -> (i32, i32, i32) {
    %c1_i32 = arith.constant 1 : i32
    %0 = arith.muli %arg0, %c1_i32 : i32
    %1 = arith.addi %0, %arg2 : i32
    %c0_i32 = arith.constant 0 : i32
    %c0_i32_0 = arith.constant 0 : i32
    return %arg1, %c0_i32, %1 : i32, i32, i32
  }
  func.func @transform_1(%arg0: i32, %arg1: i32, %arg2: i32) -> (i32, i32, i32) {
    %c1_i32 = arith.constant 1 : i32
    %0 = arith.muli %arg0, %c1_i32 : i32
    %1 = arith.addi %0, %arg2 : i32
    %c0_i32 = arith.constant 0 : i32
    %c0_i32_0 = arith.constant 0 : i32
    return %arg1, %c0_i32, %1 : i32, i32, i32
  }
  func.func @transform_2(%arg0: i32, %arg1: i32, %arg2: i32) -> (i32, i32, i32) {
    %c1_i32 = arith.constant 1 : i32
    %0 = arith.muli %arg0, %c1_i32 : i32
    %1 = arith.addi %0, %arg2 : i32
    %c0_i32 = arith.constant 0 : i32
    %c0_i32_0 = arith.constant 0 : i32
    return %arg1, %c0_i32, %1 : i32, i32, i32
  }
  func.func @transform_3(%arg0: i32, %arg1: i32, %arg2: i32) -> (i32, i32, i32) {
    %c0_i32 = arith.constant 0 : i32
    %c0_i32_0 = arith.constant 0 : i32
    %c0_i32_1 = arith.constant 0 : i32
    return %arg0, %c0_i32, %c0_i32_0 : i32, i32, i32
  }
}

</mosaic_0001>

<llo_original>
// kernel: loss_forward.1
$region0: #{loss_forward.1}
  #allocation0 [shape = 'u32[]', space=smem, size = 0x4, offset = 0x4, fixed_abs, tag = 'smem constant byte address 0x4 - core index']
  #allocation1 [shape = 'u32[144,128]{1,0:T(1,128)}', space=vmem, size = 0x12000, scoped, tag = 'internal scratch']
  #allocation2 [shape = 'f32[4,128]{1,0:T(4,128)}', space=vmem, size = 0x800, scoped, tag = 'scratch operand']
  %s0 = inlined_call_operand.vmem [shape: f32[2,4,2048], index: 0, kind: input, shape index: {}]
  %s1 = inlined_call_operand.vmem [shape: f32[2,4,2048], index: 1, kind: input, shape index: {}]
  %s2 = inlined_call_operand.vmem [shape: s32[2,1,2048], index: 2, kind: input, shape index: {}]
  %s3 = inlined_call_operand.vmem [shape: f32[1,4,128], index: 3, kind: output, shape index: {}]
  %s4 = sld [smem:[#allocation0]]
  $region53: #{loss_forward.1} parent=0
    _
  %s6 = ssub.s32 1, %s4
  %s7 = scalar_select 0, %s6, %s4
  loop: start=0, step=1, limit=4
  $region2: #{loss_forward.1} parent=0 // loop_pre_header
    _
  $region3: #{loss_forward.1} parent=0 // loop_header
    %s9 = sphi 0, %s13
    %p10 = scmp.ge.s32.totalorder %s9, 4
    %s16 = sphi 0, %s35
    %s17 = sphi 0, %s31
    %s18 = sphi 0, %s27
    %s19 = sphi 0, %s16
    %s20 = sphi 0, %s17
    %s21 = sphi 0, %s18
    %s22 = sphi 0, %s19
    %s23 = sphi 0, %s20
    %s24 = sphi 0, %s21
    %s42 = sphi 0, %s44
    %s45 = sphi 0, %s42
    %s46 = sphi 0, %s45
    %s62 = sphi 0, %s46
    %s72 = sphi 0, %s74
    %s75 = sphi 0, %s72
    %s76 = sphi 0, %s75
    %s92 = sphi 0, %s76
    %s102 = sphi 0, %s104
    %s105 = sphi 0, %s102
    %s106 = sphi 0, %s105
    %s122 = sphi 0, %s106
    %s128 = sphi 0, %s130
    %s131 = sphi 0, %s128
    %s132 = sphi 0, %s131
    %s148 = sphi 0, %s132
  $region4: #{loss_forward.1} parent=0 // loop_header_branch
    %12 = sbr.rel (%p10) target = $region8
  $region5: #{loss_forward.1} parent=0 // loop_body
    %s14 = ssub.s32 %s9, 1
    %s15 = ssub.s32 %s9, 2
    %s25 = sadd.s32 1, %s18
    %p26 = scmp.ge.s32.totalorder %s25, 1
    %s27 = scalar_select %p26, 0, %s25
    %s28 = sadd.s32 1, %s17
    %s29 = scalar_select %p26, %s28, %s17
    %p30 = scmp.ge.s32.totalorder %s29, 2
    %s31 = scalar_select %p30, 0, %s29
    %s32 = sadd.s32 1, %s16
    %s33 = scalar_select %p30, %s32, %s16
    %p34 = scmp.ge.s32.totalorder %s33, 1
    %s35 = scalar_select %p34, 0, %s33
    %s36 = sadd.s32 %s16, %s18
    %s37 = sadd.s32 %s35, %s27
    %s38 = ssub.s32 %s17, %s31
    %s39 = ssub.s32 %s36, %s37
    %s40 = sor.u32 %s38, %s39
    %p41 = scmp.eq.s32.totalorder %s40, 0
    %s43 = sadd.s32 %s42, 1
    %s44 = scalar_select %p41, %s42, %s43
    %p47 = pneg %p41
    %p48 = scmp.eq.s32.totalorder %s9, 1
    %p49 = por %p47, %p48
    %p50 = scmp.ne.s32.totalorder %s42, %s45
    %p51 = scmp.eq.s32.totalorder %s9, 0
    %p52 = por %p50, %p51
    %p53 = scmp.ne.s32.totalorder %s42, %s45
    %p54 = scmp.eq.s32.totalorder %s14, 1
    %p55 = por %p53, %p54
    %p56 = scmp.ne.s32.totalorder %s45, %s46
    %p57 = scmp.eq.s32.totalorder %s14, 0
    %p58 = por %p56, %p57
    %p59 = scmp.ne.s32.totalorder %s45, %s46
    %p60 = scmp.eq.s32.totalorder %s15, 1
    %p61 = por %p59, %p60
    %p63 = scmp.ne.s32.totalorder %s46, %s62
    %p64 = scmp.eq.s32.totalorder %s15, 0
    %p65 = por %p63, %p64
    %s66 = sadd.s32 %s16, %s18
    %s67 = sadd.s32 %s35, %s27
    %s68 = ssub.s32 %s17, %s31
    %s69 = ssub.s32 %s66, %s67
    %s70 = sor.u32 %s68, %s69
    %p71 = scmp.eq.s32.totalorder %s70, 0
    %s73 = sadd.s32 %s72, 1
    %s74 = scalar_select %p71, %s72, %s73
    %p77 = pneg %p71
    %p78 = scmp.eq.s32.totalorder %s9, 1
    %p79 = por %p77, %p78
    %p80 = scmp.ne.s32.totalorder %s72, %s75
    %p81 = scmp.eq.s32.totalorder %s9, 0
    %p82 = por %p80, %p81
    %p83 = scmp.ne.s32.totalorder %s72, %s75
    %p84 = scmp.eq.s32.totalorder %s14, 1
    %p85 = por %p83, %p84
    %p86 = scmp.ne.s32.totalorder %s75, %s76
    %p87 = scmp.eq.s32.totalorder %s14, 0
    %p88 = por %p86, %p87
    %p89 = scmp.ne.s32.totalorder %s75, %s76
    %p90 = scmp.eq.s32.totalorder %s15, 1
    %p91 = por %p89, %p90
    %p93 = scmp.ne.s32.totalorder %s76, %s92
    %p94 = scmp.eq.s32.totalorder %s15, 0
    %p95 = por %p93, %p94
    %s96 = sadd.s32 %s16, %s18
    %s97 = sadd.s32 %s35, %s27
    %s98 = ssub.s32 %s17, %s31
    %s99 = ssub.s32 %s96, %s97
    %s100 = sor.u32 %s98, %s99
    %p101 = scmp.eq.s32.totalorder %s100, 0
    %s103 = sadd.s32 %s102, 1
    %s104 = scalar_select %p101, %s102, %s103
    %p107 = pneg %p101
    %p108 = scmp.eq.s32.totalorder %s9, 1
    %p109 = por %p107, %p108
    %p110 = scmp.ne.s32.totalorder %s102, %s105
    %p111 = scmp.eq.s32.totalorder %s9, 0
    %p112 = por %p110, %p111
    %p113 = scmp.ne.s32.totalorder %s102, %s105
    %p114 = scmp.eq.s32.totalorder %s14, 1
    %p115 = por %p113, %p114
    %p116 = scmp.ne.s32.totalorder %s105, %s106
    %p117 = scmp.eq.s32.totalorder %s14, 0
    %p118 = por %p116, %p117
    %p119 = scmp.ne.s32.totalorder %s105, %s106
    %p120 = scmp.eq.s32.totalorder %s15, 1
    %p121 = por %p119, %p120
    %p123 = scmp.ne.s32.totalorder %s106, %s122
    %p124 = scmp.eq.s32.totalorder %s15, 0
    %p125 = por %p123, %p124
    %s126 = ssub.s32 %s16, %s35
    %p127 = scmp.eq.s32.totalorder %s126, 0
    %s129 = sadd.s32 %s128, 1
    %s130 = scalar_select %p127, %s128, %s129
    %p133 = pneg %p127
    %p134 = scmp.eq.s32.totalorder %s9, 1
    %p135 = por %p133, %p134
    %p136 = scmp.ne.s32.totalorder %s128, %s131
    %p137 = scmp.eq.s32.totalorder %s9, 0
    %p138 = por %p136, %p137
    %p139 = scmp.ne.s32.totalorder %s128, %s131
    %p140 = scmp.eq.s32.totalorder %s14, 1
    %p141 = por %p139, %p140
    %p142 = scmp.ne.s32.totalorder %s131, %s132
    %p143 = scmp.eq.s32.totalorder %s14, 0
    %p144 = por %p142, %p143
    %p145 = scmp.ne.s32.totalorder %s131, %s132
    %p146 = scmp.eq.s32.totalorder %s15, 1
    %p147 = por %p145, %p146
    %p149 = scmp.ne.s32.totalorder %s132, %s148
    %p150 = scmp.eq.s32.totalorder %s15, 0
    %p151 = por %p149, %p150
    %p152 = scmp.le.s32.totalorder 1, %s9
    %p153 = scmp.lt.s32.totalorder %s9, 3
    %p154 = pnand %p152, %p153
    %p155 = pneg %p154
    // Predicated region
    $region9: #{loss_forward.1} parent=5 // pred_check
      _
    $region10: #{loss_forward.1} parent=5 // pred_check_branch
      %157 = sbr.rel (%p154) target = $region12
    $region11: #{loss_forward.1} parent=5 // pred_region
      %s158 = ssub.s32 %s9, 1
    $region12: #{loss_forward.1} parent=5 // pred_fallthru
      _
    %p159 = scmp.lt.s32.totalorder %s9, 2
    // Predicated region
    $region13: #{loss_forward.1} parent=5 // pred_check
      %p160 = pneg %p159
    $region14: #{loss_forward.1} parent=5 // pred_check_branch
      %162 = sbr.rel (%p160) target = $region16
    $region15: #{loss_forward.1} parent=5 // pred_region
      // Predicated region
      $region17: #{loss_forward.1} parent=15 // pred_check
        %p163 = pneg %p52
      $region18: #{loss_forward.1} parent=15 // pred_check_branch
        %165 = sbr.rel (%p163) target = $region20
      $region19: #{loss_forward.1} parent=15 // pred_region
        %s166 = sadd.s32 %s16, %s18
        %s167 = smul.u32 16, %s166
        %p168 = scmp.lt.s32.totalorder %s17, 1
        %s169 = scalar_select %p168, %s17, 1
        %p170 = scmp.lt.s32.totalorder %s167, 15
        %s171 = scalar_select %p170, %s167, 15
        %s172 = smul.addr %s169, 16
        %s173 = sadd.s32 %s171, %s172
        %s174 = smul.addr %s173, 4
        %s175 = scalar_lea.vmem %s0, %s174
        %s176 = sadd.s32 %s16, %s18
        %s177 = smul.u32 16, %s176
      $region20: #{loss_forward.1} parent=15 // pred_fallthru
        _
      // Predicated region
      $region21: #{loss_forward.1} parent=15 // pred_check
        %p178 = pneg %p82
      $region22: #{loss_forward.1} parent=15 // pred_check_branch
        %180 = sbr.rel (%p178) target = $region24
      $region23: #{loss_forward.1} parent=15 // pred_region
        %s181 = sadd.s32 %s16, %s18
        %s182 = smul.u32 16, %s181
        %p183 = scmp.lt.s32.totalorder %s17, 1
        %s184 = scalar_select %p183, %s17, 1
        %p185 = scmp.lt.s32.totalorder %s182, 15
        %s186 = scalar_select %p185, %s182, 15
        %s187 = smul.addr %s184, 16
        %s188 = sadd.s32 %s186, %s187
        %s189 = smul.addr %s188, 4
        %s190 = scalar_lea.vmem %s1, %s189
        %s191 = sadd.s32 %s16, %s18
        %s192 = smul.u32 16, %s191
      $region24: #{loss_forward.1} parent=15 // pred_fallthru
        _
      // Predicated region
      $region25: #{loss_forward.1} parent=15 // pred_check
        %p193 = pneg %p112
      $region26: #{loss_forward.1} parent=15 // pred_check_branch
        %195 = sbr.rel (%p193) target = $region28
      $region27: #{loss_forward.1} parent=15 // pred_region
        %s196 = sadd.s32 %s16, %s18
        %s197 = smul.u32 16, %s196
        %p198 = scmp.lt.s32.totalorder %s17, 1
        %s199 = scalar_select %p198, %s17, 1
        %p200 = scmp.lt.s32.totalorder %s197, 15
        %s201 = scalar_select %p200, %s197, 15
        %s202 = smul.addr %s199, 16
        %s203 = sadd.s32 %s201, %s202
        %s204 = scalar_lea.vmem %s2, %s203
        %s205 = sadd.s32 %s16, %s18
        %s206 = smul.u32 16, %s205
      $region28: #{loss_forward.1} parent=15 // pred_fallthru
        _
    $region16: #{loss_forward.1} parent=5 // pred_fallthru
      _
    %p207 = scmp.le.s32.totalorder 1, %s9
    %p208 = scmp.lt.s32.totalorder %s9, 3
    %p209 = pnand %p207, %p208
    %p210 = pneg %p209
    // Predicated region
    $region29: #{loss_forward.1} parent=5 // pred_check
      _
    $region30: #{loss_forward.1} parent=5 // pred_check_branch
      %212 = sbr.rel (%p209) target = $region32
    $region31: #{loss_forward.1} parent=5 // pred_region
      %s213 = ssub.s32 %s9, 1
      %s214 = sadd.s32 %s19, %s21
      %s215 = smul.u32 16, %s214
      %p216 = scmp.lt.s32.totalorder %s20, 1
      %s217 = scalar_select %p216, %s20, 1
      %p218 = scmp.lt.s32.totalorder %s215, 15
      %s219 = scalar_select %p218, %s215, 15
      %s220 = smul.addr %s217, 16
      %s221 = sadd.s32 %s219, %s220
      %s222 = smul.addr %s221, 4
      %s223 = scalar_lea.vmem %s0, %s222
      %p224 = pneg %p58
      %p225 = pneg %p55
      %s226 = sadd.s32 %s19, %s21
      %s227 = smul.u32 16, %s226
      %p228 = scmp.lt.s32.totalorder %s20, 1
      %s229 = scalar_select %p228, %s20, 1
      %p230 = scmp.lt.s32.totalorder %s227, 15
      %s231 = scalar_select %p230, %s227, 15
      %s232 = smul.addr %s229, 16
      %s233 = sadd.s32 %s231, %s232
      %s234 = smul.addr %s233, 4
      %s235 = scalar_lea.vmem %s1, %s234
      %p236 = pneg %p88
      %p237 = pneg %p85
      %s238 = sadd.s32 %s19, %s21
      %s239 = smul.u32 16, %s238
      %p240 = scmp.lt.s32.totalorder %s20, 1
      %s241 = scalar_select %p240, %s20, 1
      %p242 = scmp.lt.s32.totalorder %s239, 15
      %s243 = scalar_select %p242, %s239, 15
      %s244 = smul.addr %s241, 16
      %s245 = sadd.s32 %s243, %s244
      %s246 = scalar_lea.vmem %s2, %s245
      %p247 = pneg %p118
      %p248 = pneg %p115
      %p249 = pneg %p144
      %p250 = pneg %p141
      %p251 = scmp.lt.s32.totalorder %s19, 0
      %s252 = scalar_select %p251, %s19, 0
      %s253 = smul.addr %s252, 4
      %s254 = scalar_lea.vmem %s3, %s253
      %s255 = sadd.s32 %s19, %s21
      %s256 = smul.u32 16, %s255
      %p257 = scmp.lt.s32.totalorder %s20, 1
      %s258 = scalar_select %p257, %s20, 1
      %p259 = scmp.lt.s32.totalorder %s256, 15
      %s260 = scalar_select %p259, %s256, 15
      %s261 = smul.addr %s258, 16
      %s262 = sadd.s32 %s260, %s261
      %s263 = smul.addr %s262, 4
      %s264 = scalar_lea.vmem %s0, %s263
      %s265 = sadd.s32 %s19, %s21
      %s266 = smul.u32 16, %s265
      %s267 = sadd.s32 %s19, %s21
      %s268 = smul.u32 16, %s267
      %p269 = scmp.lt.s32.totalorder %s20, 1
      %s270 = scalar_select %p269, %s20, 1
      %p271 = scmp.lt.s32.totalorder %s268, 15
      %s272 = scalar_select %p271, %s268, 15
      %s273 = smul.addr %s270, 16
      %s274 = sadd.s32 %s272, %s273
      %s275 = smul.addr %s274, 4
      %s276 = scalar_lea.vmem %s1, %s275
      %s277 = sadd.s32 %s19, %s21
      %s278 = smul.u32 16, %s277
      %s279 = sadd.s32 %s19, %s21
      %s280 = smul.u32 16, %s279
      %p281 = scmp.lt.s32.totalorder %s20, 1
      %s282 = scalar_select %p281, %s20, 1
      %p283 = scmp.lt.s32.totalorder %s280, 15
      %s284 = scalar_select %p283, %s280, 15
      %s285 = smul.addr %s282, 16
      %s286 = sadd.s32 %s284, %s285
      %s287 = scalar_lea.vmem %s2, %s286
      %s288 = sadd.s32 %s19, %s21
      %s289 = smul.u32 16, %s288
      %p290 = scmp.lt.s32.totalorder %s19, 0
      %s291 = scalar_select %p290, %s19, 0
      %s292 = smul.addr %s291, 4
      %s293 = scalar_lea.vmem %s3, %s292
      %p294 = scmp.eq.s32.totalorder %s20, 0
      %p295 = scmp.eq.s32.totalorder %s21, 0
      %p296 = pnand %p294, %p295
      %p297 = pneg %p296
      // Predicated region
      $region33: #{loss_forward.1} parent=31 // pred_check
        _
      $region34: #{loss_forward.1} parent=31 // pred_check_branch
        %299 = sbr.rel (%p296) target = $region36
      $region35: #{loss_forward.1} parent=31 // pred_region
        %300 = vst [vmem:[#allocation2] sm:$0xf] 0.0
      $region36: #{loss_forward.1} parent=31 // pred_fallthru
        _
      %v301 = vld [vmem:[%s287] sm:$0xff]
      %v302 = vld [vmem:[%s287 + $0x8] sm:$0xff]
      %v303 = vlaneseq
      %v304 = vshrl.u32 %v303, 7
      %v305 = vlaneseq
      %v306 = vshrl.u32 %v305, 7
      %v307 = vsub.s32 0, %v306
      %v308 = vrot.slane %v301, %v307
      %v309 = vlaneseq
      %v310 = vshrl.u32 %v309, 7
      %v311 = vsub.s32 1, %v310
      %v312 = vrot.slane %v301, %v311
      %v313 = vlaneseq
      %v314 = vshrl.u32 %v313, 7
      %v315 = vsub.s32 2, %v314
      %v316 = vrot.slane %v301, %v315
      %v317 = vlaneseq
      %v318 = vshrl.u32 %v317, 7
      %v319 = vsub.s32 3, %v318
      %v320 = vrot.slane %v301, %v319
      %v321 = vlaneseq
      %v322 = vshrl.u32 %v321, 7
      %v323 = vsub.s32 4, %v322
      %v324 = vrot.slane %v301, %v323
      %v325 = vlaneseq
      %v326 = vshrl.u32 %v325, 7
      %v327 = vsub.s32 5, %v326
      %v328 = vrot.slane %v301, %v327
      %v329 = vlaneseq
      %v330 = vshrl.u32 %v329, 7
      %v331 = vsub.s32 6, %v330
      %v332 = vrot.slane %v301, %v331
      %v333 = vlaneseq
      %v334 = vshrl.u32 %v333, 7
      %v335 = vsub.s32 7, %v334
      %v336 = vrot.slane %v301, %v335
      %v337 = vlaneseq
      %v338 = vshrl.u32 %v337, 7
      %v339 = vsub.s32 0, %v338
      %v340 = vrot.slane %v302, %v339
      %v341 = vlaneseq
      %v342 = vshrl.u32 %v341, 7
      %v343 = vsub.s32 1, %v342
      %v344 = vrot.slane %v302, %v343
      %v345 = vlaneseq
      %v346 = vshrl.u32 %v345, 7
      %v347 = vsub.s32 2, %v346
      %v348 = vrot.slane %v302, %v347
      %v349 = vlaneseq
      %v350 = vshrl.u32 %v349, 7
      %v351 = vsub.s32 3, %v350
      %v352 = vrot.slane %v302, %v351
      %v353 = vlaneseq
      %v354 = vshrl.u32 %v353, 7
      %v355 = vsub.s32 4, %v354
      %v356 = vrot.slane %v302, %v355
      %v357 = vlaneseq
      %v358 = vshrl.u32 %v357, 7
      %v359 = vsub.s32 5, %v358
      %v360 = vrot.slane %v302, %v359
      %v361 = vlaneseq
      %v362 = vshrl.u32 %v361, 7
      %v363 = vsub.s32 6, %v362
      %v364 = vrot.slane %v302, %v363
      %v365 = vlaneseq
      %v366 = vshrl.u32 %v365, 7
      %v367 = vsub.s32 7, %v366
      %v368 = vrot.slane %v302, %v367
      %vm369 = vcmp.eq.s32.totalorder %v304, %v308
      %vm370 = vcmp.eq.s32.totalorder %v304, %v312
      %vm371 = vcmp.eq.s32.totalorder %v304, %v316
      %vm372 = vcmp.eq.s32.totalorder %v304, %v320
      %vm373 = vcmp.eq.s32.totalorder %v304, %v324
      %vm374 = vcmp.eq.s32.totalorder %v304, %v328
      %vm375 = vcmp.eq.s32.totalorder %v304, %v332
      %vm376 = vcmp.eq.s32.totalorder %v304, %v336
      %vm377 = vcmp.eq.s32.totalorder %v304, %v340
      %vm378 = vcmp.eq.s32.totalorder %v304, %v344
      %vm379 = vcmp.eq.s32.totalorder %v304, %v348
      %vm380 = vcmp.eq.s32.totalorder %v304, %v352
      %vm381 = vcmp.eq.s32.totalorder %v304, %v356
      %vm382 = vcmp.eq.s32.totalorder %v304, %v360
      %vm383 = vcmp.eq.s32.totalorder %v304, %v364
      %vm384 = vcmp.eq.s32.totalorder %v304, %v368
      %v385 = vsel %vm369, 1, 0
      %v386 = vsel %vm370, 1, 0
      %v387 = vsel %vm371, 1, 0
      %v388 = vsel %vm372, 1, 0
      %v389 = vsel %vm373, 1, 0
      %v390 = vsel %vm374, 1, 0
      %v391 = vsel %vm375, 1, 0
      %v392 = vsel %vm376, 1, 0
      %v393 = vsel %vm377, 1, 0
      %v394 = vsel %vm378, 1, 0
      %v395 = vsel %vm379, 1, 0
      %v396 = vsel %vm380, 1, 0
      %v397 = vsel %vm381, 1, 0
      %v398 = vsel %vm382, 1, 0
      %v399 = vsel %vm383, 1, 0
      %v400 = vsel %vm384, 1, 0
      %v401 = vcvt.s32.f32 %v385
      %v402 = vcvt.s32.f32 %v386
      %v403 = vcvt.s32.f32 %v387
      %v404 = vcvt.s32.f32 %v388
      %v405 = vcvt.s32.f32 %v389
      %v406 = vcvt.s32.f32 %v390
      %v407 = vcvt.s32.f32 %v391
      %v408 = vcvt.s32.f32 %v392
      %v409 = vcvt.s32.f32 %v393
      %v410 = vcvt.s32.f32 %v394
      %v411 = vcvt.s32.f32 %v395
      %v412 = vcvt.s32.f32 %v396
      %v413 = vcvt.s32.f32 %v397
      %v414 = vcvt.s32.f32 %v398
      %v415 = vcvt.s32.f32 %v399
      %v416 = vcvt.s32.f32 %v400
      %vm417 = vcmask 1043456
      %v418 = vsel %vm417, %v401, 0.0
      %v419 = vsel %vm417, %v402, 0.0
      %v420 = vadd.f32 %v418, %v419
      %v421 = vsel %vm417, %v403, 0.0
      %v422 = vadd.f32 %v420, %v421
      %v423 = vsel %vm417, %v404, 0.0
      %v424 = vadd.f32 %v422, %v423
      %v425 = vsel %vm417, %v405, 0.0
      %v426 = vadd.f32 %v424, %v425
      %v427 = vsel %vm417, %v406, 0.0
      %v428 = vadd.f32 %v426, %v427
      %v429 = vsel %vm417, %v407, 0.0
      %v430 = vadd.f32 %v428, %v429
      %v431 = vsel %vm417, %v408, 0.0
      %v432 = vadd.f32 %v430, %v431
      %v433 = vsel %vm417, %v409, 0.0
      %v434 = vadd.f32 %v432, %v433
      %v435 = vsel %vm417, %v410, 0.0
      %v436 = vadd.f32 %v434, %v435
      %v437 = vsel %vm417, %v411, 0.0
      %v438 = vadd.f32 %v436, %v437
      %v439 = vsel %vm417, %v412, 0.0
      %v440 = vadd.f32 %v438, %v439
      %v441 = vsel %vm417, %v413, 0.0
      %v442 = vadd.f32 %v440, %v441
      %v443 = vsel %vm417, %v414, 0.0
      %v444 = vadd.f32 %v442, %v443
      %v445 = vsel %vm417, %v415, 0.0
      %v446 = vadd.f32 %v444, %v445
      %v447 = vsel %vm417, %v416, 0.0
      %v448 = vadd.f32 %v446, %v447
      %449 = vadd.xlane.f32.xlu0 %v448
      %v450 = vpop.xlane.xlu0 %449
      %v451 = vld [vmem:[%s264] sm:$0xff]
      %v452 = vld [vmem:[%s264 + $0x8] sm:$0xff]
      %v453 = vld [vmem:[%s264 + $0x10] sm:$0xff]
      %v454 = vld [vmem:[%s264 + $0x18] sm:$0xff]
      %v455 = vld [vmem:[%s264 + $0x20] sm:$0xff]
      %v456 = vld [vmem:[%s264 + $0x28] sm:$0xff]
      %v457 = vld [vmem:[%s264 + $0x30] sm:$0xff]
      %v458 = vld [vmem:[%s264 + $0x38] sm:$0xff]
      %v467 = vcombine.high %v451, %v451
      %v468 = vcombine.high %v452, %v452
      %v469 = vcombine.high %v453, %v453
      %v470 = vcombine.high %v454, %v454
      %v471 = vcombine.high %v455, %v455
      %v472 = vcombine.high %v456, %v456
      %v473 = vcombine.high %v457, %v457
      %v474 = vcombine.high %v458, %v458
      %v483 = vsel %vm417, %v451, -inf
      %v484 = vrot.slane %v483, 4
      %v485 = vmax.f32 %v483, %v484
      %v486 = vrot.slane %v485, 2
      %v487 = vmax.f32 %v485, %v486
      %v488 = vrot.slane %v487, 1
      %v489 = vmax.f32 %v487, %v488
      %v490 = vsel %vm417, %v467, -inf
      %v491 = vrot.slane %v490, 4
      %v492 = vmax.f32 %v490, %v491
      %v493 = vrot.slane %v492, 2
      %v494 = vmax.f32 %v492, %v493
      %v495 = vrot.slane %v494, 1
      %v496 = vmax.f32 %v494, %v495
      %v497 = vsel %vm417, %v452, -inf
      %v498 = vrot.slane %v497, 4
      %v499 = vmax.f32 %v497, %v498
      %v500 = vrot.slane %v499, 2
      %v501 = vmax.f32 %v499, %v500
      %v502 = vrot.slane %v501, 1
      %v503 = vmax.f32 %v501, %v502
      %v504 = vsel %vm417, %v468, -inf
      %v505 = vrot.slane %v504, 4
      %v506 = vmax.f32 %v504, %v505
      %v507 = vrot.slane %v506, 2
      %v508 = vmax.f32 %v506, %v507
      %v509 = vrot.slane %v508, 1
      %v510 = vmax.f32 %v508, %v509
      %v511 = vsel %vm417, %v453, -inf
      %v512 = vrot.slane %v511, 4
      %v513 = vmax.f32 %v511, %v512
      %v514 = vrot.slane %v513, 2
      %v515 = vmax.f32 %v513, %v514
      %v516 = vrot.slane %v515, 1
      %v517 = vmax.f32 %v515, %v516
      %v518 = vsel %vm417, %v469, -inf
      %v519 = vrot.slane %v518, 4
      %v520 = vmax.f32 %v518, %v519
      %v521 = vrot.slane %v520, 2
      %v522 = vmax.f32 %v520, %v521
      %v523 = vrot.slane %v522, 1
      %v524 = vmax.f32 %v522, %v523
      %v525 = vsel %vm417, %v454, -inf
      %v526 = vrot.slane %v525, 4
      %v527 = vmax.f32 %v525, %v526
      %v528 = vrot.slane %v527, 2
      %v529 = vmax.f32 %v527, %v528
      %v530 = vrot.slane %v529, 1
      %v531 = vmax.f32 %v529, %v530
      %v532 = vsel %vm417, %v470, -inf
      %v533 = vrot.slane %v532, 4
      %v534 = vmax.f32 %v532, %v533
      %v535 = vrot.slane %v534, 2
      %v536 = vmax.f32 %v534, %v535
      %v537 = vrot.slane %v536, 1
      %v538 = vmax.f32 %v536, %v537
      %v539 = vsel %vm417, %v455, -inf
      %v540 = vrot.slane %v539, 4
      %v541 = vmax.f32 %v539, %v540
      %v542 = vrot.slane %v541, 2
      %v543 = vmax.f32 %v541, %v542
      %v544 = vrot.slane %v543, 1
      %v545 = vmax.f32 %v543, %v544
      %v546 = vsel %vm417, %v471, -inf
      %v547 = vrot.slane %v546, 4
      %v548 = vmax.f32 %v546, %v547
      %v549 = vrot.slane %v548, 2
      %v550 = vmax.f32 %v548, %v549
      %v551 = vrot.slane %v550, 1
      %v552 = vmax.f32 %v550, %v551
      %v553 = vsel %vm417, %v456, -inf
      %v554 = vrot.slane %v553, 4
      %v555 = vmax.f32 %v553, %v554
      %v556 = vrot.slane %v555, 2
      %v557 = vmax.f32 %v555, %v556
      %v558 = vrot.slane %v557, 1
      %v559 = vmax.f32 %v557, %v558
      %v560 = vsel %vm417, %v472, -inf
      %v561 = vrot.slane %v560, 4
      %v562 = vmax.f32 %v560, %v561
      %v563 = vrot.slane %v562, 2
      %v564 = vmax.f32 %v562, %v563
      %v565 = vrot.slane %v564, 1
      %v566 = vmax.f32 %v564, %v565
      %v567 = vsel %vm417, %v457, -inf
      %v568 = vrot.slane %v567, 4
      %v569 = vmax.f32 %v567, %v568
      %v570 = vrot.slane %v569, 2
      %v571 = vmax.f32 %v569, %v570
      %v572 = vrot.slane %v571, 1
      %v573 = vmax.f32 %v571, %v572
      %v574 = vsel %vm417, %v473, -inf
      %v575 = vrot.slane %v574, 4
      %v576 = vmax.f32 %v574, %v575
      %v577 = vrot.slane %v576, 2
      %v578 = vmax.f32 %v576, %v577
      %v579 = vrot.slane %v578, 1
      %v580 = vmax.f32 %v578, %v579
      %v581 = vsel %vm417, %v458, -inf
      %v582 = vrot.slane %v581, 4
      %v583 = vmax.f32 %v581, %v582
      %v584 = vrot.slane %v583, 2
      %v585 = vmax.f32 %v583, %v584
      %v586 = vrot.slane %v585, 1
      %v587 = vmax.f32 %v585, %v586
      %v588 = vsel %vm417, %v474, -inf
      %v589 = vrot.slane %v588, 4
      %v590 = vmax.f32 %v588, %v589
      %v591 = vrot.slane %v590, 2
      %v592 = vmax.f32 %v590, %v591
      %v593 = vrot.slane %v592, 1
      %v594 = vmax.f32 %v592, %v593
      %v611 = vcombine.low %v489, %v496
      %v612 = vcombine.low %v503, %v510
      %v613 = vcombine.low %v517, %v524
      %v614 = vcombine.low %v531, %v538
      %v615 = vcombine.low %v545, %v552
      %v616 = vcombine.low %v559, %v566
      %v617 = vcombine.low %v573, %v580
      %v618 = vcombine.low %v587, %v594
      %v627 = vsub.f32 %v451, %v611
      %v628 = vsub.f32 %v452, %v612
      %v629 = vsub.f32 %v453, %v613
      %v630 = vsub.f32 %v454, %v614
      %v631 = vsub.f32 %v455, %v615
      %v632 = vsub.f32 %v456, %v616
      %v633 = vsub.f32 %v457, %v617
      %v634 = vsub.f32 %v458, %v618
      %v635 = vmul.f32 %v627, 1.442695
      %v636 = vpow.pop %v635
      %v637 = vmul.f32 %v628, 1.442695
      %v638 = vpow.pop %v637
      %v639 = vmul.f32 %v629, 1.442695
      %v640 = vpow.pop %v639
      %v641 = vmul.f32 %v630, 1.442695
      %v642 = vpow.pop %v641
      %v643 = vmul.f32 %v631, 1.442695
      %v644 = vpow.pop %v643
      %v645 = vmul.f32 %v632, 1.442695
      %v646 = vpow.pop %v645
      %v647 = vmul.f32 %v633, 1.442695
      %v648 = vpow.pop %v647
      %v649 = vmul.f32 %v634, 1.442695
      %v650 = vpow.pop %v649
      %v659 = vcombine.high %v636, %v636
      %v660 = vcombine.high %v638, %v638
      %v661 = vcombine.high %v640, %v640
      %v662 = vcombine.high %v642, %v642
      %v663 = vcombine.high %v644, %v644
      %v664 = vcombine.high %v646, %v646
      %v665 = vcombine.high %v648, %v648
      %v666 = vcombine.high %v650, %v650
      %v675 = vsel %vm417, %v636, 0.0
      %v676 = vrot.slane %v675, 4
      %v677 = vadd.f32 %v675, %v676
      %v678 = vrot.slane %v677, 2
      %v679 = vadd.f32 %v677, %v678
      %v680 = vrot.slane %v679, 1
      %v681 = vadd.f32 %v679, %v680
      %v682 = vsel %vm417, %v659, 0.0
      %v683 = vrot.slane %v682, 4
      %v684 = vadd.f32 %v682, %v683
      %v685 = vrot.slane %v684, 2
      %v686 = vadd.f32 %v684, %v685
      %v687 = vrot.slane %v686, 1
      %v688 = vadd.f32 %v686, %v687
      %v689 = vsel %vm417, %v638, 0.0
      %v690 = vrot.slane %v689, 4
      %v691 = vadd.f32 %v689, %v690
      %v692 = vrot.slane %v691, 2
      %v693 = vadd.f32 %v691, %v692
      %v694 = vrot.slane %v693, 1
      %v695 = vadd.f32 %v693, %v694
      %v696 = vsel %vm417, %v660, 0.0
      %v697 = vrot.slane %v696, 4
      %v698 = vadd.f32 %v696, %v697
      %v699 = vrot.slane %v698, 2
      %v700 = vadd.f32 %v698, %v699
      %v701 = vrot.slane %v700, 1
      %v702 = vadd.f32 %v700, %v701
      %v703 = vsel %vm417, %v640, 0.0
      %v704 = vrot.slane %v703, 4
      %v705 = vadd.f32 %v703, %v704
      %v706 = vrot.slane %v705, 2
      %v707 = vadd.f32 %v705, %v706
      %v708 = vrot.slane %v707, 1
      %v709 = vadd.f32 %v707, %v708
      %v710 = vsel %vm417, %v661, 0.0
      %v711 = vrot.slane %v710, 4
      %v712 = vadd.f32 %v710, %v711
      %v713 = vrot.slane %v712, 2
      %v714 = vadd.f32 %v712, %v713
      %v715 = vrot.slane %v714, 1
      %v716 = vadd.f32 %v714, %v715
      %v717 = vsel %vm417, %v642, 0.0
      %v718 = vrot.slane %v717, 4
      %v719 = vadd.f32 %v717, %v718
      %v720 = vrot.slane %v719, 2
      %v721 = vadd.f32 %v719, %v720
      %v722 = vrot.slane %v721, 1
      %v723 = vadd.f32 %v721, %v722
      %v724 = vsel %vm417, %v662, 0.0
      %v725 = vrot.slane %v724, 4
      %v726 = vadd.f32 %v724, %v725
      %v727 = vrot.slane %v726, 2
      %v728 = vadd.f32 %v726, %v727
      %v729 = vrot.slane %v728, 1
      %v730 = vadd.f32 %v728, %v729
      %v731 = vsel %vm417, %v644, 0.0
      %v732 = vrot.slane %v731, 4
      %v733 = vadd.f32 %v731, %v732
      %v734 = vrot.slane %v733, 2
      %v735 = vadd.f32 %v733, %v734
      %v736 = vrot.slane %v735, 1
      %v737 = vadd.f32 %v735, %v736
      %v738 = vsel %vm417, %v663, 0.0
      %v739 = vrot.slane %v738, 4
      %v740 = vadd.f32 %v738, %v739
      %v741 = vrot.slane %v740, 2
      %v742 = vadd.f32 %v740, %v741
      %v743 = vrot.slane %v742, 1
      %v744 = vadd.f32 %v742, %v743
      %v745 = vsel %vm417, %v646, 0.0
      %v746 = vrot.slane %v745, 4
      %v747 = vadd.f32 %v745, %v746
      %v748 = vrot.slane %v747, 2
      %v749 = vadd.f32 %v747, %v748
      %v750 = vrot.slane %v749, 1
      %v751 = vadd.f32 %v749, %v750
      %v752 = vsel %vm417, %v664, 0.0
      %v753 = vrot.slane %v752, 4
      %v754 = vadd.f32 %v752, %v753
      %v755 = vrot.slane %v754, 2
      %v756 = vadd.f32 %v754, %v755
      %v757 = vrot.slane %v756, 1
      %v758 = vadd.f32 %v756, %v757
      %v759 = vsel %vm417, %v648, 0.0
      %v760 = vrot.slane %v759, 4
      %v761 = vadd.f32 %v759, %v760
      %v762 = vrot.slane %v761, 2
      %v763 = vadd.f32 %v761, %v762
      %v764 = vrot.slane %v763, 1
      %v765 = vadd.f32 %v763, %v764
      %v766 = vsel %vm417, %v665, 0.0
      %v767 = vrot.slane %v766, 4
      %v768 = vadd.f32 %v766, %v767
      %v769 = vrot.slane %v768, 2
      %v770 = vadd.f32 %v768, %v769
      %v771 = vrot.slane %v770, 1
      %v772 = vadd.f32 %v770, %v771
      %v773 = vsel %vm417, %v650, 0.0
      %v774 = vrot.slane %v773, 4
      %v775 = vadd.f32 %v773, %v774
      %v776 = vrot.slane %v775, 2
      %v777 = vadd.f32 %v775, %v776
      %v778 = vrot.slane %v777, 1
      %v779 = vadd.f32 %v777, %v778
      %v780 = vsel %vm417, %v666, 0.0
      %v781 = vrot.slane %v780, 4
      %v782 = vadd.f32 %v780, %v781
      %v783 = vrot.slane %v782, 2
      %v784 = vadd.f32 %v782, %v783
      %v785 = vrot.slane %v784, 1
      %v786 = vadd.f32 %v784, %v785
      %v787 = vrcp.pop %v681
      %v788 = vrcp.pop %v688
      %v789 = vrcp.pop %v695
      %v790 = vrcp.pop %v702
      %v791 = vrcp.pop %v709
      %v792 = vrcp.pop %v716
      %v793 = vrcp.pop %v723
      %v794 = vrcp.pop %v730
      %v795 = vrcp.pop %v737
      %v796 = vrcp.pop %v744
      %v797 = vrcp.pop %v751
      %v798 = vrcp.pop %v758
      %v799 = vrcp.pop %v765
      %v800 = vrcp.pop %v772
      %v801 = vrcp.pop %v779
      %v802 = vrcp.pop %v786
      %v803 = vmul.f32 %v681, %v787
      %v804 = vmul.f32 %v688, %v788
      %v805 = vmul.f32 %v695, %v789
      %v806 = vmul.f32 %v702, %v790
      %v807 = vmul.f32 %v709, %v791
      %v808 = vmul.f32 %v716, %v792
      %v809 = vmul.f32 %v723, %v793
      %v810 = vmul.f32 %v730, %v794
      %v811 = vmul.f32 %v737, %v795
      %v812 = vmul.f32 %v744, %v796
      %v813 = vmul.f32 %v751, %v797
      %v814 = vmul.f32 %v758, %v798
      %v815 = vmul.f32 %v765, %v799
      %v816 = vmul.f32 %v772, %v800
      %v817 = vmul.f32 %v779, %v801
      %v818 = vmul.f32 %v786, %v802
      %v819 = vsub.f32 2.0, %v803
      %v820 = vsub.f32 2.0, %v804
      %v821 = vsub.f32 2.0, %v805
      %v822 = vsub.f32 2.0, %v806
      %v823 = vsub.f32 2.0, %v807
      %v824 = vsub.f32 2.0, %v808
      %v825 = vsub.f32 2.0, %v809
      %v826 = vsub.f32 2.0, %v810
      %v827 = vsub.f32 2.0, %v811
      %v828 = vsub.f32 2.0, %v812
      %v829 = vsub.f32 2.0, %v813
      %v830 = vsub.f32 2.0, %v814
      %v831 = vsub.f32 2.0, %v815
      %v832 = vsub.f32 2.0, %v816
      %v833 = vsub.f32 2.0, %v817
      %v834 = vsub.f32 2.0, %v818
      %v835 = vmul.f32 %v787, %v819
      %v836 = vmul.f32 %v788, %v820
      %v837 = vmul.f32 %v789, %v821
      %v838 = vmul.f32 %v790, %v822
      %v839 = vmul.f32 %v791, %v823
      %v840 = vmul.f32 %v792, %v824
      %v841 = vmul.f32 %v793, %v825
      %v842 = vmul.f32 %v794, %v826
      %v843 = vmul.f32 %v795, %v827
      %v844 = vmul.f32 %v796, %v828
      %v845 = vmul.f32 %v797, %v829
      %v846 = vmul.f32 %v798, %v830
      %v847 = vmul.f32 %v799, %v831
      %v848 = vmul.f32 %v800, %v832
      %v849 = vmul.f32 %v801, %v833
      %v850 = vmul.f32 %v802, %v834
      %v867 = vcombine.low %v835, %v836
      %v868 = vcombine.low %v837, %v838
      %v869 = vcombine.low %v839, %v840
      %v870 = vcombine.low %v841, %v842
      %v871 = vcombine.low %v843, %v844
      %v872 = vcombine.low %v845, %v846
      %v873 = vcombine.low %v847, %v848
      %v874 = vcombine.low %v849, %v850
      %v883 = vmul.f32 %v636, %v867
      %v884 = vmul.f32 %v638, %v868
      %v885 = vmul.f32 %v640, %v869
      %v886 = vmul.f32 %v642, %v870
      %v887 = vmul.f32 %v644, %v871
      %v888 = vmul.f32 %v646, %v872
      %v889 = vmul.f32 %v648, %v873
      %v890 = vmul.f32 %v650, %v874
      %v907 = vcombine.low %v401, %v402
      %v908 = vcombine.low %v403, %v404
      %v909 = vcombine.low %v405, %v406
      %v910 = vcombine.low %v407, %v408
      %v911 = vcombine.low %v409, %v410
      %v912 = vcombine.low %v411, %v412
      %v913 = vcombine.low %v413, %v414
      %v914 = vcombine.low %v415, %v416
      %v923 = vmul.f32 %v883, %v907
      %v924 = vmul.f32 %v884, %v908
      %v925 = vmul.f32 %v885, %v909
      %v926 = vmul.f32 %v886, %v910
      %v927 = vmul.f32 %v887, %v911
      %v928 = vmul.f32 %v888, %v912
      %v929 = vmul.f32 %v889, %v913
      %v930 = vmul.f32 %v890, %v914
      %v939 = vcombine.high %v923, %v923
      %v940 = vcombine.high %v924, %v924
      %v941 = vcombine.high %v925, %v925
      %v942 = vcombine.high %v926, %v926
      %v943 = vcombine.high %v927, %v927
      %v944 = vcombine.high %v928, %v928
      %v945 = vcombine.high %v929, %v929
      %v946 = vcombine.high %v930, %v930
      %v955 = vsel %vm417, %v923, 0.0
      %v956 = vsel %vm417, %v939, 0.0
      %v957 = vadd.f32 %v955, %v956
      %v958 = vsel %vm417, %v924, 0.0
      %v959 = vadd.f32 %v957, %v958
      %v960 = vsel %vm417, %v940, 0.0
      %v961 = vadd.f32 %v959, %v960
      %v962 = vsel %vm417, %v925, 0.0
      %v963 = vadd.f32 %v961, %v962
      %v964 = vsel %vm417, %v941, 0.0
      %v965 = vadd.f32 %v963, %v964
      %v966 = vsel %vm417, %v926, 0.0
      %v967 = vadd.f32 %v965, %v966
      %v968 = vsel %vm417, %v942, 0.0
      %v969 = vadd.f32 %v967, %v968
      %v970 = vsel %vm417, %v927, 0.0
      %v971 = vadd.f32 %v969, %v970
      %v972 = vsel %vm417, %v943, 0.0
      %v973 = vadd.f32 %v971, %v972
      %v974 = vsel %vm417, %v928, 0.0
      %v975 = vadd.f32 %v973, %v974
      %v976 = vsel %vm417, %v944, 0.0
      %v977 = vadd.f32 %v975, %v976
      %v978 = vsel %vm417, %v929, 0.0
      %v979 = vadd.f32 %v977, %v978
      %v980 = vsel %vm417, %v945, 0.0
      %v981 = vadd.f32 %v979, %v980
      %v982 = vsel %vm417, %v930, 0.0
      %v983 = vadd.f32 %v981, %v982
      %v984 = vsel %vm417, %v946, 0.0
      %v985 = vadd.f32 %v983, %v984
      %986 = vadd.xlane.f32.xlu0 %v985
      %v987 = vpop.xlane.xlu0 %986
      %v996 = vcombine.high %v883, %v883
      %v997 = vcombine.high %v884, %v884
      %v998 = vcombine.high %v885, %v885
      %v999 = vcombine.high %v886, %v886
      %v1000 = vcombine.high %v887, %v887
      %v1001 = vcombine.high %v888, %v888
      %v1002 = vcombine.high %v889, %v889
      %v1003 = vcombine.high %v890, %v890
      %v1012 = vsel %vm417, %v883, 0.0
      %v1013 = vsel %vm417, %v996, 0.0
      %v1014 = vadd.f32 %v1012, %v1013
      %v1015 = vsel %vm417, %v884, 0.0
      %v1016 = vadd.f32 %v1014, %v1015
      %v1017 = vsel %vm417, %v997, 0.0
      %v1018 = vadd.f32 %v1016, %v1017
      %v1019 = vsel %vm417, %v885, 0.0
      %v1020 = vadd.f32 %v1018, %v1019
      %v1021 = vsel %vm417, %v998, 0.0
      %v1022 = vadd.f32 %v1020, %v1021
      %v1023 = vsel %vm417, %v886, 0.0
      %v1024 = vadd.f32 %v1022, %v1023
      %v1025 = vsel %vm417, %v999, 0.0
      %v1026 = vadd.f32 %v1024, %v1025
      %v1027 = vsel %vm417, %v887, 0.0
      %v1028 = vadd.f32 %v1026, %v1027
      %v1029 = vsel %vm417, %v1000, 0.0
      %v1030 = vadd.f32 %v1028, %v1029
      %v1031 = vsel %vm417, %v888, 0.0
      %v1032 = vadd.f32 %v1030, %v1031
      %v1033 = vsel %vm417, %v1001, 0.0
      %v1034 = vadd.f32 %v1032, %v1033
      %v1035 = vsel %vm417, %v889, 0.0
      %v1036 = vadd.f32 %v1034, %v1035
      %v1037 = vsel %vm417, %v1002, 0.0
      %v1038 = vadd.f32 %v1036, %v1037
      %v1039 = vsel %vm417, %v890, 0.0
      %v1040 = vadd.f32 %v1038, %v1039
      %v1041 = vsel %vm417, %v1003, 0.0
      %v1042 = vadd.f32 %v1040, %v1041
      %1043 = vadd.xlane.f32.xlu0 %v1042
      %v1044 = vpop.xlane.xlu0 %1043
      %v1045 = vsub.f32 %v1044, %v987
      %v1046 = vsub.f32 %v450, %v987
      %v1047 = vlog2.pop %v681
      %v1048 = vmul.f32 %v1047, 0.6931472
      %v1049 = vlog2.pop %v688
      %v1050 = vmul.f32 %v1049, 0.6931472
      %v1051 = vlog2.pop %v695
      %v1052 = vmul.f32 %v1051, 0.6931472
      %v1053 = vlog2.pop %v702
      %v1054 = vmul.f32 %v1053, 0.6931472
      %v1055 = vlog2.pop %v709
      %v1056 = vmul.f32 %v1055, 0.6931472
      %v1057 = vlog2.pop %v716
      %v1058 = vmul.f32 %v1057, 0.6931472
      %v1059 = vlog2.pop %v723
      %v1060 = vmul.f32 %v1059, 0.6931472
      %v1061 = vlog2.pop %v730
      %v1062 = vmul.f32 %v1061, 0.6931472
      %v1063 = vlog2.pop %v737
      %v1064 = vmul.f32 %v1063, 0.6931472
      %v1065 = vlog2.pop %v744
      %v1066 = vmul.f32 %v1065, 0.6931472
      %v1067 = vlog2.pop %v751
      %v1068 = vmul.f32 %v1067, 0.6931472
      %v1069 = vlog2.pop %v758
      %v1070 = vmul.f32 %v1069, 0.6931472
      %v1071 = vlog2.pop %v765
      %v1072 = vmul.f32 %v1071, 0.6931472
      %v1073 = vlog2.pop %v772
      %v1074 = vmul.f32 %v1073, 0.6931472
      %v1075 = vlog2.pop %v779
      %v1076 = vmul.f32 %v1075, 0.6931472
      %v1077 = vlog2.pop %v786
      %v1078 = vmul.f32 %v1077, 0.6931472
      %v1079 = vadd.f32 %v1048, %v489
      %v1080 = vadd.f32 %v1050, %v496
      %v1081 = vadd.f32 %v1052, %v503
      %v1082 = vadd.f32 %v1054, %v510
      %v1083 = vadd.f32 %v1056, %v517
      %v1084 = vadd.f32 %v1058, %v524
      %v1085 = vadd.f32 %v1060, %v531
      %v1086 = vadd.f32 %v1062, %v538
      %v1087 = vadd.f32 %v1064, %v545
      %v1088 = vadd.f32 %v1066, %v552
      %v1089 = vadd.f32 %v1068, %v559
      %v1090 = vadd.f32 %v1070, %v566
      %v1091 = vadd.f32 %v1072, %v573
      %v1092 = vadd.f32 %v1074, %v580
      %v1093 = vadd.f32 %v1076, %v587
      %v1094 = vadd.f32 %v1078, %v594
      %v1095 = vmul.f32 %v401, %v1079
      %v1096 = vmul.f32 %v402, %v1080
      %v1097 = vmul.f32 %v403, %v1081
      %v1098 = vmul.f32 %v404, %v1082
      %v1099 = vmul.f32 %v405, %v1083
      %v1100 = vmul.f32 %v406, %v1084
      %v1101 = vmul.f32 %v407, %v1085
      %v1102 = vmul.f32 %v408, %v1086
      %v1103 = vmul.f32 %v409, %v1087
      %v1104 = vmul.f32 %v410, %v1088
      %v1105 = vmul.f32 %v411, %v1089
      %v1106 = vmul.f32 %v412, %v1090
      %v1107 = vmul.f32 %v413, %v1091
      %v1108 = vmul.f32 %v414, %v1092
      %v1109 = vmul.f32 %v415, %v1093
      %v1110 = vmul.f32 %v416, %v1094
      %v1111 = vsel %vm417, %v1095, 0.0
      %v1112 = vsel %vm417, %v1096, 0.0
      %v1113 = vadd.f32 %v1111, %v1112
      %v1114 = vsel %vm417, %v1097, 0.0
      %v1115 = vadd.f32 %v1113, %v1114
      %v1116 = vsel %vm417, %v1098, 0.0
      %v1117 = vadd.f32 %v1115, %v1116
      %v1118 = vsel %vm417, %v1099, 0.0
      %v1119 = vadd.f32 %v1117, %v1118
      %v1120 = vsel %vm417, %v1100, 0.0
      %v1121 = vadd.f32 %v1119, %v1120
      %v1122 = vsel %vm417, %v1101, 0.0
      %v1123 = vadd.f32 %v1121, %v1122
      %v1124 = vsel %vm417, %v1102, 0.0
      %v1125 = vadd.f32 %v1123, %v1124
      %v1126 = vsel %vm417, %v1103, 0.0
      %v1127 = vadd.f32 %v1125, %v1126
      %v1128 = vsel %vm417, %v1104, 0.0
      %v1129 = vadd.f32 %v1127, %v1128
      %v1130 = vsel %vm417, %v1105, 0.0
      %v1131 = vadd.f32 %v1129, %v1130
      %v1132 = vsel %vm417, %v1106, 0.0
      %v1133 = vadd.f32 %v1131, %v1132
      %v1134 = vsel %vm417, %v1107, 0.0
      %v1135 = vadd.f32 %v1133, %v1134
      %v1136 = vsel %vm417, %v1108, 0.0
      %v1137 = vadd.f32 %v1135, %v1136
      %v1138 = vsel %vm417, %v1109, 0.0
      %v1139 = vadd.f32 %v1137, %v1138
      %v1140 = vsel %vm417, %v1110, 0.0
      %v1141 = vadd.f32 %v1139, %v1140
      %1142 = vadd.xlane.f32.xlu0 %v1141
      %v1143 = vpop.xlane.xlu0 %1142
      %v1144 = vmul.f32 %v401, %v451
      %v1145 = vmul.f32 %v402, %v467
      %v1146 = vmul.f32 %v403, %v452
      %v1147 = vmul.f32 %v404, %v468
      %v1148 = vmul.f32 %v405, %v453
      %v1149 = vmul.f32 %v406, %v469
      %v1150 = vmul.f32 %v407, %v454
      %v1151 = vmul.f32 %v408, %v470
      %v1152 = vmul.f32 %v409, %v455
      %v1153 = vmul.f32 %v410, %v471
      %v1154 = vmul.f32 %v411, %v456
      %v1155 = vmul.f32 %v412, %v472
      %v1156 = vmul.f32 %v413, %v457
      %v1157 = vmul.f32 %v414, %v473
      %v1158 = vmul.f32 %v415, %v458
      %v1159 = vmul.f32 %v416, %v474
      %v1160 = vsel %vm417, %v1144, 0.0
      %v1161 = vsel %vm417, %v1145, 0.0
      %v1162 = vadd.f32 %v1160, %v1161
      %v1163 = vsel %vm417, %v1146, 0.0
      %v1164 = vadd.f32 %v1162, %v1163
      %v1165 = vsel %vm417, %v1147, 0.0
      %v1166 = vadd.f32 %v1164, %v1165
      %v1167 = vsel %vm417, %v1148, 0.0
      %v1168 = vadd.f32 %v1166, %v1167
      %v1169 = vsel %vm417, %v1149, 0.0
      %v1170 = vadd.f32 %v1168, %v1169
      %v1171 = vsel %vm417, %v1150, 0.0
      %v1172 = vadd.f32 %v1170, %v1171
      %v1173 = vsel %vm417, %v1151, 0.0
      %v1174 = vadd.f32 %v1172, %v1173
      %v1175 = vsel %vm417, %v1152, 0.0
      %v1176 = vadd.f32 %v1174, %v1175
      %v1177 = vsel %vm417, %v1153, 0.0
      %v1178 = vadd.f32 %v1176, %v1177
      %v1179 = vsel %vm417, %v1154, 0.0
      %v1180 = vadd.f32 %v1178, %v1179
      %v1181 = vsel %vm417, %v1155, 0.0
      %v1182 = vadd.f32 %v1180, %v1181
      %v1183 = vsel %vm417, %v1156, 0.0
      %v1184 = vadd.f32 %v1182, %v1183
      %v1185 = vsel %vm417, %v1157, 0.0
      %v1186 = vadd.f32 %v1184, %v1185
      %v1187 = vsel %vm417, %v1158, 0.0
      %v1188 = vadd.f32 %v1186, %v1187
      %v1189 = vsel %vm417, %v1159, 0.0
      %v1190 = vadd.f32 %v1188, %v1189
      %1191 = vadd.xlane.f32.xlu0 %v1190
      %v1192 = vpop.xlane.xlu0 %1191
      %v1193 = vsub.f32 %v1143, %v1192
      %v1194 = vld [vmem:[%s276] sm:$0xff]
      %v1195 = vld [vmem:[%s276 + $0x8] sm:$0xff]
      %v1196 = vld [vmem:[%s276 + $0x10] sm:$0xff]
      %v1197 = vld [vmem:[%s276 + $0x18] sm:$0xff]
      %v1198 = vld [vmem:[%s276 + $0x20] sm:$0xff]
      %v1199 = vld [vmem:[%s276 + $0x28] sm:$0xff]
      %v1200 = vld [vmem:[%s276 + $0x30] sm:$0xff]
      %v1201 = vld [vmem:[%s276 + $0x38] sm:$0xff]
      %v1210 = vcombine.high %v1194, %v1194
      %v1211 = vcombine.high %v1195, %v1195
      %v1212 = vcombine.high %v1196, %v1196
      %v1213 = vcombine.high %v1197, %v1197
      %v1214 = vcombine.high %v1198, %v1198
      %v1215 = vcombine.high %v1199, %v1199
      %v1216 = vcombine.high %v1200, %v1200
      %v1217 = vcombine.high %v1201, %v1201
      %v1226 = vsel %vm417, %v1194, -inf
      %v1227 = vrot.slane %v1226, 4
      %v1228 = vmax.f32 %v1226, %v1227
      %v1229 = vrot.slane %v1228, 2
      %v1230 = vmax.f32 %v1228, %v1229
      %v1231 = vrot.slane %v1230, 1
      %v1232 = vmax.f32 %v1230, %v1231
      %v1233 = vsel %vm417, %v1210, -inf
      %v1234 = vrot.slane %v1233, 4
      %v1235 = vmax.f32 %v1233, %v1234
      %v1236 = vrot.slane %v1235, 2
      %v1237 = vmax.f32 %v1235, %v1236
      %v1238 = vrot.slane %v1237, 1
      %v1239 = vmax.f32 %v1237, %v1238
      %v1240 = vsel %vm417, %v1195, -inf
      %v1241 = vrot.slane %v1240, 4
      %v1242 = vmax.f32 %v1240, %v1241
      %v1243 = vrot.slane %v1242, 2
      %v1244 = vmax.f32 %v1242, %v1243
      %v1245 = vrot.slane %v1244, 1
      %v1246 = vmax.f32 %v1244, %v1245
      %v1247 = vsel %vm417, %v1211, -inf
      %v1248 = vrot.slane %v1247, 4
      %v1249 = vmax.f32 %v1247, %v1248
      %v1250 = vrot.slane %v1249, 2
      %v1251 = vmax.f32 %v1249, %v1250
      %v1252 = vrot.slane %v1251, 1
      %v1253 = vmax.f32 %v1251, %v1252
      %v1254 = vsel %vm417, %v1196, -inf
      %v1255 = vrot.slane %v1254, 4
      %v1256 = vmax.f32 %v1254, %v1255
      %v1257 = vrot.slane %v1256, 2
      %v1258 = vmax.f32 %v1256, %v1257
      %v1259 = vrot.slane %v1258, 1
      %v1260 = vmax.f32 %v1258, %v1259
      %v1261 = vsel %vm417, %v1212, -inf
      %v1262 = vrot.slane %v1261, 4
      %v1263 = vmax.f32 %v1261, %v1262
      %v1264 = vrot.slane %v1263, 2
      %v1265 = vmax.f32 %v1263, %v1264
      %v1266 = vrot.slane %v1265, 1
      %v1267 = vmax.f32 %v1265, %v1266
      %v1268 = vsel %vm417, %v1197, -inf
      %v1269 = vrot.slane %v1268, 4
      %v1270 = vmax.f32 %v1268, %v1269
      %v1271 = vrot.slane %v1270, 2
      %v1272 = vmax.f32 %v1270, %v1271
      %v1273 = vrot.slane %v1272, 1
      %v1274 = vmax.f32 %v1272, %v1273
      %v1275 = vsel %vm417, %v1213, -inf
      %v1276 = vrot.slane %v1275, 4
      %v1277 = vmax.f32 %v1275, %v1276
      %v1278 = vrot.slane %v1277, 2
      %v1279 = vmax.f32 %v1277, %v1278
      %v1280 = vrot.slane %v1279, 1
      %v1281 = vmax.f32 %v1279, %v1280
      %v1282 = vsel %vm417, %v1198, -inf
      %v1283 = vrot.slane %v1282, 4
      %v1284 = vmax.f32 %v1282, %v1283
      %v1285 = vrot.slane %v1284, 2
      %v1286 = vmax.f32 %v1284, %v1285
      %v1287 = vrot.slane %v1286, 1
      %v1288 = vmax.f32 %v1286, %v1287
      %v1289 = vsel %vm417, %v1214, -inf
      %v1290 = vrot.slane %v1289, 4
      %v1291 = vmax.f32 %v1289, %v1290
      %v1292 = vrot.slane %v1291, 2
      %v1293 = vmax.f32 %v1291, %v1292
      %v1294 = vrot.slane %v1293, 1
      %v1295 = vmax.f32 %v1293, %v1294
      %v1296 = vsel %vm417, %v1199, -inf
      %v1297 = vrot.slane %v1296, 4
      %v1298 = vmax.f32 %v1296, %v1297
      %v1299 = vrot.slane %v1298, 2
      %v1300 = vmax.f32 %v1298, %v1299
      %v1301 = vrot.slane %v1300, 1
      %v1302 = vmax.f32 %v1300, %v1301
      %v1303 = vsel %vm417, %v1215, -inf
      %v1304 = vrot.slane %v1303, 4
      %v1305 = vmax.f32 %v1303, %v1304
      %v1306 = vrot.slane %v1305, 2
      %v1307 = vmax.f32 %v1305, %v1306
      %v1308 = vrot.slane %v1307, 1
      %v1309 = vmax.f32 %v1307, %v1308
      %v1310 = vsel %vm417, %v1200, -inf
      %v1311 = vrot.slane %v1310, 4
      %v1312 = vmax.f32 %v1310, %v1311
      %v1313 = vrot.slane %v1312, 2
      %v1314 = vmax.f32 %v1312, %v1313
      %v1315 = vrot.slane %v1314, 1
      %v1316 = vmax.f32 %v1314, %v1315
      %v1317 = vsel %vm417, %v1216, -inf
      %v1318 = vrot.slane %v1317, 4
      %v1319 = vmax.f32 %v1317, %v1318
      %v1320 = vrot.slane %v1319, 2
      %v1321 = vmax.f32 %v1319, %v1320
      %v1322 = vrot.slane %v1321, 1
      %v1323 = vmax.f32 %v1321, %v1322
      %v1324 = vsel %vm417, %v1201, -inf
      %v1325 = vrot.slane %v1324, 4
      %v1326 = vmax.f32 %v1324, %v1325
      %v1327 = vrot.slane %v1326, 2
      %v1328 = vmax.f32 %v1326, %v1327
      %v1329 = vrot.slane %v1328, 1
      %v1330 = vmax.f32 %v1328, %v1329
      %v1331 = vsel %vm417, %v1217, -inf
      %v1332 = vrot.slane %v1331, 4
      %v1333 = vmax.f32 %v1331, %v1332
      %v1334 = vrot.slane %v1333, 2
      %v1335 = vmax.f32 %v1333, %v1334
      %v1336 = vrot.slane %v1335, 1
      %v1337 = vmax.f32 %v1335, %v1336
      %v1354 = vcombine.low %v1232, %v1239
      %v1355 = vcombine.low %v1246, %v1253
      %v1356 = vcombine.low %v1260, %v1267
      %v1357 = vcombine.low %v1274, %v1281
      %v1358 = vcombine.low %v1288, %v1295
      %v1359 = vcombine.low %v1302, %v1309
      %v1360 = vcombine.low %v1316, %v1323
      %v1361 = vcombine.low %v1330, %v1337
      %v1370 = vsub.f32 %v1194, %v1354
      %v1371 = vsub.f32 %v1195, %v1355
      %v1372 = vsub.f32 %v1196, %v1356
      %v1373 = vsub.f32 %v1197, %v1357
      %v1374 = vsub.f32 %v1198, %v1358
      %v1375 = vsub.f32 %v1199, %v1359
      %v1376 = vsub.f32 %v1200, %v1360
      %v1377 = vsub.f32 %v1201, %v1361
      %v1378 = vmul.f32 %v1370, 1.442695
      %v1379 = vpow.pop %v1378
      %v1380 = vmul.f32 %v1371, 1.442695
      %v1381 = vpow.pop %v1380
      %v1382 = vmul.f32 %v1372, 1.442695
      %v1383 = vpow.pop %v1382
      %v1384 = vmul.f32 %v1373, 1.442695
      %v1385 = vpow.pop %v1384
      %v1386 = vmul.f32 %v1374, 1.442695
      %v1387 = vpow.pop %v1386
      %v1388 = vmul.f32 %v1375, 1.442695
      %v1389 = vpow.pop %v1388
      %v1390 = vmul.f32 %v1376, 1.442695
      %v1391 = vpow.pop %v1390
      %v1392 = vmul.f32 %v1377, 1.442695
      %v1393 = vpow.pop %v1392
      %v1402 = vcombine.high %v1379, %v1379
      %v1403 = vcombine.high %v1381, %v1381
      %v1404 = vcombine.high %v1383, %v1383
      %v1405 = vcombine.high %v1385, %v1385
      %v1406 = vcombine.high %v1387, %v1387
      %v1407 = vcombine.high %v1389, %v1389
      %v1408 = vcombine.high %v1391, %v1391
      %v1409 = vcombine.high %v1393, %v1393
      %v1418 = vsel %vm417, %v1379, 0.0
      %v1419 = vrot.slane %v1418, 4
      %v1420 = vadd.f32 %v1418, %v1419
      %v1421 = vrot.slane %v1420, 2
      %v1422 = vadd.f32 %v1420, %v1421
      %v1423 = vrot.slane %v1422, 1
      %v1424 = vadd.f32 %v1422, %v1423
      %v1425 = vsel %vm417, %v1402, 0.0
      %v1426 = vrot.slane %v1425, 4
      %v1427 = vadd.f32 %v1425, %v1426
      %v1428 = vrot.slane %v1427, 2
      %v1429 = vadd.f32 %v1427, %v1428
      %v1430 = vrot.slane %v1429, 1
      %v1431 = vadd.f32 %v1429, %v1430
      %v1432 = vsel %vm417, %v1381, 0.0
      %v1433 = vrot.slane %v1432, 4
      %v1434 = vadd.f32 %v1432, %v1433
      %v1435 = vrot.slane %v1434, 2
      %v1436 = vadd.f32 %v1434, %v1435
      %v1437 = vrot.slane %v1436, 1
      %v1438 = vadd.f32 %v1436, %v1437
      %v1439 = vsel %vm417, %v1403, 0.0
      %v1440 = vrot.slane %v1439, 4
      %v1441 = vadd.f32 %v1439, %v1440
      %v1442 = vrot.slane %v1441, 2
      %v1443 = vadd.f32 %v1441, %v1442
      %v1444 = vrot.slane %v1443, 1
      %v1445 = vadd.f32 %v1443, %v1444
      %v1446 = vsel %vm417, %v1383, 0.0
      %v1447 = vrot.slane %v1446, 4
      %v1448 = vadd.f32 %v1446, %v1447
      %v1449 = vrot.slane %v1448, 2
      %v1450 = vadd.f32 %v1448, %v1449
      %v1451 = vrot.slane %v1450, 1
      %v1452 = vadd.f32 %v1450, %v1451
      %v1453 = vsel %vm417, %v1404, 0.0
      %v1454 = vrot.slane %v1453, 4
      %v1455 = vadd.f32 %v1453, %v1454
      %v1456 = vrot.slane %v1455, 2
      %v1457 = vadd.f32 %v1455, %v1456
      %v1458 = vrot.slane %v1457, 1
      %v1459 = vadd.f32 %v1457, %v1458
      %v1460 = vsel %vm417, %v1385, 0.0
      %v1461 = vrot.slane %v1460, 4
      %v1462 = vadd.f32 %v1460, %v1461
      %v1463 = vrot.slane %v1462, 2
      %v1464 = vadd.f32 %v1462, %v1463
      %v1465 = vrot.slane %v1464, 1
      %v1466 = vadd.f32 %v1464, %v1465
      %v1467 = vsel %vm417, %v1405, 0.0
      %v1468 = vrot.slane %v1467, 4
      %v1469 = vadd.f32 %v1467, %v1468
      %v1470 = vrot.slane %v1469, 2
      %v1471 = vadd.f32 %v1469, %v1470
      %v1472 = vrot.slane %v1471, 1
      %v1473 = vadd.f32 %v1471, %v1472
      %v1474 = vsel %vm417, %v1387, 0.0
      %v1475 = vrot.slane %v1474, 4
      %v1476 = vadd.f32 %v1474, %v1475
      %v1477 = vrot.slane %v1476, 2
      %v1478 = vadd.f32 %v1476, %v1477
      %v1479 = vrot.slane %v1478, 1
      %v1480 = vadd.f32 %v1478, %v1479
      %v1481 = vsel %vm417, %v1406, 0.0
      %v1482 = vrot.slane %v1481, 4
      %v1483 = vadd.f32 %v1481, %v1482
      %v1484 = vrot.slane %v1483, 2
      %v1485 = vadd.f32 %v1483, %v1484
      %v1486 = vrot.slane %v1485, 1
      %v1487 = vadd.f32 %v1485, %v1486
      %v1488 = vsel %vm417, %v1389, 0.0
      %v1489 = vrot.slane %v1488, 4
      %v1490 = vadd.f32 %v1488, %v1489
      %v1491 = vrot.slane %v1490, 2
      %v1492 = vadd.f32 %v1490, %v1491
      %v1493 = vrot.slane %v1492, 1
      %v1494 = vadd.f32 %v1492, %v1493
      %v1495 = vsel %vm417, %v1407, 0.0
      %v1496 = vrot.slane %v1495, 4
      %v1497 = vadd.f32 %v1495, %v1496
      %v1498 = vrot.slane %v1497, 2
      %v1499 = vadd.f32 %v1497, %v1498
      %v1500 = vrot.slane %v1499, 1
      %v1501 = vadd.f32 %v1499, %v1500
      %v1502 = vsel %vm417, %v1391, 0.0
      %v1503 = vrot.slane %v1502, 4
      %v1504 = vadd.f32 %v1502, %v1503
      %v1505 = vrot.slane %v1504, 2
      %v1506 = vadd.f32 %v1504, %v1505
      %v1507 = vrot.slane %v1506, 1
      %v1508 = vadd.f32 %v1506, %v1507
      %v1509 = vsel %vm417, %v1408, 0.0
      %v1510 = vrot.slane %v1509, 4
      %v1511 = vadd.f32 %v1509, %v1510
      %v1512 = vrot.slane %v1511, 2
      %v1513 = vadd.f32 %v1511, %v1512
      %v1514 = vrot.slane %v1513, 1
      %v1515 = vadd.f32 %v1513, %v1514
      %v1516 = vsel %vm417, %v1393, 0.0
      %v1517 = vrot.slane %v1516, 4
      %v1518 = vadd.f32 %v1516, %v1517
      %v1519 = vrot.slane %v1518, 2
      %v1520 = vadd.f32 %v1518, %v1519
      %v1521 = vrot.slane %v1520, 1
      %v1522 = vadd.f32 %v1520, %v1521
      %v1523 = vsel %vm417, %v1409, 0.0
      %v1524 = vrot.slane %v1523, 4
      %v1525 = vadd.f32 %v1523, %v1524
      %v1526 = vrot.slane %v1525, 2
      %v1527 = vadd.f32 %v1525, %v1526
      %v1528 = vrot.slane %v1527, 1
      %v1529 = vadd.f32 %v1527, %v1528
      %v1530 = vrcp.pop %v1424
      %v1531 = vrcp.pop %v1431
      %v1532 = vrcp.pop %v1438
      %v1533 = vrcp.pop %v1445
      %v1534 = vrcp.pop %v1452
      %v1535 = vrcp.pop %v1459
      %v1536 = vrcp.pop %v1466
      %v1537 = vrcp.pop %v1473
      %v1538 = vrcp.pop %v1480
      %v1539 = vrcp.pop %v1487
      %v1540 = vrcp.pop %v1494
      %v1541 = vrcp.pop %v1501
      %v1542 = vrcp.pop %v1508
      %v1543 = vrcp.pop %v1515
      %v1544 = vrcp.pop %v1522
      %v1545 = vrcp.pop %v1529
      %v1546 = vmul.f32 %v1424, %v1530
      %v1547 = vmul.f32 %v1431, %v1531
      %v1548 = vmul.f32 %v1438, %v1532
      %v1549 = vmul.f32 %v1445, %v1533
      %v1550 = vmul.f32 %v1452, %v1534
      %v1551 = vmul.f32 %v1459, %v1535
      %v1552 = vmul.f32 %v1466, %v1536
      %v1553 = vmul.f32 %v1473, %v1537
      %v1554 = vmul.f32 %v1480, %v1538
      %v1555 = vmul.f32 %v1487, %v1539
      %v1556 = vmul.f32 %v1494, %v1540
      %v1557 = vmul.f32 %v1501, %v1541
      %v1558 = vmul.f32 %v1508, %v1542
      %v1559 = vmul.f32 %v1515, %v1543
      %v1560 = vmul.f32 %v1522, %v1544
      %v1561 = vmul.f32 %v1529, %v1545
      %v1562 = vsub.f32 2.0, %v1546
      %v1563 = vsub.f32 2.0, %v1547
      %v1564 = vsub.f32 2.0, %v1548
      %v1565 = vsub.f32 2.0, %v1549
      %v1566 = vsub.f32 2.0, %v1550
      %v1567 = vsub.f32 2.0, %v1551
      %v1568 = vsub.f32 2.0, %v1552
      %v1569 = vsub.f32 2.0, %v1553
      %v1570 = vsub.f32 2.0, %v1554
      %v1571 = vsub.f32 2.0, %v1555
      %v1572 = vsub.f32 2.0, %v1556
      %v1573 = vsub.f32 2.0, %v1557
      %v1574 = vsub.f32 2.0, %v1558
      %v1575 = vsub.f32 2.0, %v1559
      %v1576 = vsub.f32 2.0, %v1560
      %v1577 = vsub.f32 2.0, %v1561
      %v1578 = vmul.f32 %v1530, %v1562
      %v1579 = vmul.f32 %v1531, %v1563
      %v1580 = vmul.f32 %v1532, %v1564
      %v1581 = vmul.f32 %v1533, %v1565
      %v1582 = vmul.f32 %v1534, %v1566
      %v1583 = vmul.f32 %v1535, %v1567
      %v1584 = vmul.f32 %v1536, %v1568
      %v1585 = vmul.f32 %v1537, %v1569
      %v1586 = vmul.f32 %v1538, %v1570
      %v1587 = vmul.f32 %v1539, %v1571
      %v1588 = vmul.f32 %v1540, %v1572
      %v1589 = vmul.f32 %v1541, %v1573
      %v1590 = vmul.f32 %v1542, %v1574
      %v1591 = vmul.f32 %v1543, %v1575
      %v1592 = vmul.f32 %v1544, %v1576
      %v1593 = vmul.f32 %v1545, %v1577
      %v1610 = vcombine.low %v1578, %v1579
      %v1611 = vcombine.low %v1580, %v1581
      %v1612 = vcombine.low %v1582, %v1583
      %v1613 = vcombine.low %v1584, %v1585
      %v1614 = vcombine.low %v1586, %v1587
      %v1615 = vcombine.low %v1588, %v1589
      %v1616 = vcombine.low %v1590, %v1591
      %v1617 = vcombine.low %v1592, %v1593
      %v1626 = vmul.f32 %v1379, %v1610
      %v1627 = vmul.f32 %v1381, %v1611
      %v1628 = vmul.f32 %v1383, %v1612
      %v1629 = vmul.f32 %v1385, %v1613
      %v1630 = vmul.f32 %v1387, %v1614
      %v1631 = vmul.f32 %v1389, %v1615
      %v1632 = vmul.f32 %v1391, %v1616
      %v1633 = vmul.f32 %v1393, %v1617
      %v1634 = vmul.f32 %v1626, %v907
      %v1635 = vmul.f32 %v1627, %v908
      %v1636 = vmul.f32 %v1628, %v909
      %v1637 = vmul.f32 %v1629, %v910
      %v1638 = vmul.f32 %v1630, %v911
      %v1639 = vmul.f32 %v1631, %v912
      %v1640 = vmul.f32 %v1632, %v913
      %v1641 = vmul.f32 %v1633, %v914
      %v1650 = vcombine.high %v1634, %v1634
      %v1651 = vcombine.high %v1635, %v1635
      %v1652 = vcombine.high %v1636, %v1636
      %v1653 = vcombine.high %v1637, %v1637
      %v1654 = vcombine.high %v1638, %v1638
      %v1655 = vcombine.high %v1639, %v1639
      %v1656 = vcombine.high %v1640, %v1640
      %v1657 = vcombine.high %v1641, %v1641
      %v1666 = vsel %vm417, %v1634, 0.0
      %v1667 = vsel %vm417, %v1650, 0.0
      %v1668 = vadd.f32 %v1666, %v1667
      %v1669 = vsel %vm417, %v1635, 0.0
      %v1670 = vadd.f32 %v1668, %v1669
      %v1671 = vsel %vm417, %v1651, 0.0
      %v1672 = vadd.f32 %v1670, %v1671
      %v1673 = vsel %vm417, %v1636, 0.0
      %v1674 = vadd.f32 %v1672, %v1673
      %v1675 = vsel %vm417, %v1652, 0.0
      %v1676 = vadd.f32 %v1674, %v1675
      %v1677 = vsel %vm417, %v1637, 0.0
      %v1678 = vadd.f32 %v1676, %v1677
      %v1679 = vsel %vm417, %v1653, 0.0
      %v1680 = vadd.f32 %v1678, %v1679
      %v1681 = vsel %vm417, %v1638, 0.0
      %v1682 = vadd.f32 %v1680, %v1681
      %v1683 = vsel %vm417, %v1654, 0.0
      %v1684 = vadd.f32 %v1682, %v1683
      %v1685 = vsel %vm417, %v1639, 0.0
      %v1686 = vadd.f32 %v1684, %v1685
      %v1687 = vsel %vm417, %v1655, 0.0
      %v1688 = vadd.f32 %v1686, %v1687
      %v1689 = vsel %vm417, %v1640, 0.0
      %v1690 = vadd.f32 %v1688, %v1689
      %v1691 = vsel %vm417, %v1656, 0.0
      %v1692 = vadd.f32 %v1690, %v1691
      %v1693 = vsel %vm417, %v1641, 0.0
      %v1694 = vadd.f32 %v1692, %v1693
      %v1695 = vsel %vm417, %v1657, 0.0
      %v1696 = vadd.f32 %v1694, %v1695
      %1697 = vadd.xlane.f32.xlu0 %v1696
      %v1698 = vpop.xlane.xlu0 %1697
      %v1707 = vcombine.high %v1626, %v1626
      %v1708 = vcombine.high %v1627, %v1627
      %v1709 = vcombine.high %v1628, %v1628
      %v1710 = vcombine.high %v1629, %v1629
      %v1711 = vcombine.high %v1630, %v1630
      %v1712 = vcombine.high %v1631, %v1631
      %v1713 = vcombine.high %v1632, %v1632
      %v1714 = vcombine.high %v1633, %v1633
      %v1723 = vsel %vm417, %v1626, 0.0
      %v1724 = vsel %vm417, %v1707, 0.0
      %v1725 = vadd.f32 %v1723, %v1724
      %v1726 = vsel %vm417, %v1627, 0.0
      %v1727 = vadd.f32 %v1725, %v1726
      %v1728 = vsel %vm417, %v1708, 0.0
      %v1729 = vadd.f32 %v1727, %v1728
      %v1730 = vsel %vm417, %v1628, 0.0
      %v1731 = vadd.f32 %v1729, %v1730
      %v1732 = vsel %vm417, %v1709, 0.0
      %v1733 = vadd.f32 %v1731, %v1732
      %v1734 = vsel %vm417, %v1629, 0.0
      %v1735 = vadd.f32 %v1733, %v1734
      %v1736 = vsel %vm417, %v1710, 0.0
      %v1737 = vadd.f32 %v1735, %v1736
      %v1738 = vsel %vm417, %v1630, 0.0
      %v1739 = vadd.f32 %v1737, %v1738
      %v1740 = vsel %vm417, %v1711, 0.0
      %v1741 = vadd.f32 %v1739, %v1740
      %v1742 = vsel %vm417, %v1631, 0.0
      %v1743 = vadd.f32 %v1741, %v1742
      %v1744 = vsel %vm417, %v1712, 0.0
      %v1745 = vadd.f32 %v1743, %v1744
      %v1746 = vsel %vm417, %v1632, 0.0
      %v1747 = vadd.f32 %v1745, %v1746
      %v1748 = vsel %vm417, %v1713, 0.0
      %v1749 = vadd.f32 %v1747, %v1748
      %v1750 = vsel %vm417, %v1633, 0.0
      %v1751 = vadd.f32 %v1749, %v1750
      %v1752 = vsel %vm417, %v1714, 0.0
      %v1753 = vadd.f32 %v1751, %v1752
      %1754 = vadd.xlane.f32.xlu0 %v1753
      %v1755 = vpop.xlane.xlu0 %1754
      %v1756 = vsub.f32 %v1755, %v1698
      %v1757 = vsub.f32 %v450, %v1698
      %v1758 = vlog2.pop %v1424
      %v1759 = vmul.f32 %v1758, 0.6931472
      %v1760 = vlog2.pop %v1431
      %v1761 = vmul.f32 %v1760, 0.6931472
      %v1762 = vlog2.pop %v1438
      %v1763 = vmul.f32 %v1762, 0.6931472
      %v1764 = vlog2.pop %v1445
      %v1765 = vmul.f32 %v1764, 0.6931472
      %v1766 = vlog2.pop %v1452
      %v1767 = vmul.f32 %v1766, 0.6931472
      %v1768 = vlog2.pop %v1459
      %v1769 = vmul.f32 %v1768, 0.6931472
      %v1770 = vlog2.pop %v1466
      %v1771 = vmul.f32 %v1770, 0.6931472
      %v1772 = vlog2.pop %v1473
      %v1773 = vmul.f32 %v1772, 0.6931472
      %v1774 = vlog2.pop %v1480
      %v1775 = vmul.f32 %v1774, 0.6931472
      %v1776 = vlog2.pop %v1487
      %v1777 = vmul.f32 %v1776, 0.6931472
      %v1778 = vlog2.pop %v1494
      %v1779 = vmul.f32 %v1778, 0.6931472
      %v1780 = vlog2.pop %v1501
      %v1781 = vmul.f32 %v1780, 0.6931472
      %v1782 = vlog2.pop %v1508
      %v1783 = vmul.f32 %v1782, 0.6931472
      %v1784 = vlog2.pop %v1515
      %v1785 = vmul.f32 %v1784, 0.6931472
      %v1786 = vlog2.pop %v1522
      %v1787 = vmul.f32 %v1786, 0.6931472
      %v1788 = vlog2.pop %v1529
      %v1789 = vmul.f32 %v1788, 0.6931472
      %v1790 = vadd.f32 %v1759, %v1232
      %v1791 = vadd.f32 %v1761, %v1239
      %v1792 = vadd.f32 %v1763, %v1246
      %v1793 = vadd.f32 %v1765, %v1253
      %v1794 = vadd.f32 %v1767, %v1260
      %v1795 = vadd.f32 %v1769, %v1267
      %v1796 = vadd.f32 %v1771, %v1274
      %v1797 = vadd.f32 %v1773, %v1281
      %v1798 = vadd.f32 %v1775, %v1288
      %v1799 = vadd.f32 %v1777, %v1295
      %v1800 = vadd.f32 %v1779, %v1302
      %v1801 = vadd.f32 %v1781, %v1309
      %v1802 = vadd.f32 %v1783, %v1316
      %v1803 = vadd.f32 %v1785, %v1323
      %v1804 = vadd.f32 %v1787, %v1330
      %v1805 = vadd.f32 %v1789, %v1337
      %v1806 = vmul.f32 %v401, %v1790
      %v1807 = vmul.f32 %v402, %v1791
      %v1808 = vmul.f32 %v403, %v1792
      %v1809 = vmul.f32 %v404, %v1793
      %v1810 = vmul.f32 %v405, %v1794
      %v1811 = vmul.f32 %v406, %v1795
      %v1812 = vmul.f32 %v407, %v1796
      %v1813 = vmul.f32 %v408, %v1797
      %v1814 = vmul.f32 %v409, %v1798
      %v1815 = vmul.f32 %v410, %v1799
      %v1816 = vmul.f32 %v411, %v1800
      %v1817 = vmul.f32 %v412, %v1801
      %v1818 = vmul.f32 %v413, %v1802
      %v1819 = vmul.f32 %v414, %v1803
      %v1820 = vmul.f32 %v415, %v1804
      %v1821 = vmul.f32 %v416, %v1805
      %v1822 = vsel %vm417, %v1806, 0.0
      %v1823 = vsel %vm417, %v1807, 0.0
      %v1824 = vadd.f32 %v1822, %v1823
      %v1825 = vsel %vm417, %v1808, 0.0
      %v1826 = vadd.f32 %v1824, %v1825
      %v1827 = vsel %vm417, %v1809, 0.0
      %v1828 = vadd.f32 %v1826, %v1827
      %v1829 = vsel %vm417, %v1810, 0.0
      %v1830 = vadd.f32 %v1828, %v1829
      %v1831 = vsel %vm417, %v1811, 0.0
      %v1832 = vadd.f32 %v1830, %v1831
      %v1833 = vsel %vm417, %v1812, 0.0
      %v1834 = vadd.f32 %v1832, %v1833
      %v1835 = vsel %vm417, %v1813, 0.0
      %v1836 = vadd.f32 %v1834, %v1835
      %v1837 = vsel %vm417, %v1814, 0.0
      %v1838 = vadd.f32 %v1836, %v1837
      %v1839 = vsel %vm417, %v1815, 0.0
      %v1840 = vadd.f32 %v1838, %v1839
      %v1841 = vsel %vm417, %v1816, 0.0
      %v1842 = vadd.f32 %v1840, %v1841
      %v1843 = vsel %vm417, %v1817, 0.0
      %v1844 = vadd.f32 %v1842, %v1843
      %v1845 = vsel %vm417, %v1818, 0.0
      %v1846 = vadd.f32 %v1844, %v1845
      %v1847 = vsel %vm417, %v1819, 0.0
      %v1848 = vadd.f32 %v1846, %v1847
      %v1849 = vsel %vm417, %v1820, 0.0
      %v1850 = vadd.f32 %v1848, %v1849
      %v1851 = vsel %vm417, %v1821, 0.0
      %v1852 = vadd.f32 %v1850, %v1851
      %1853 = vadd.xlane.f32.xlu0 %v1852
      %v1854 = vpop.xlane.xlu0 %1853
      %v1855 = vmul.f32 %v401, %v1194
      %v1856 = vmul.f32 %v402, %v1210
      %v1857 = vmul.f32 %v403, %v1195
      %v1858 = vmul.f32 %v404, %v1211
      %v1859 = vmul.f32 %v405, %v1196
      %v1860 = vmul.f32 %v406, %v1212
      %v1861 = vmul.f32 %v407, %v1197
      %v1862 = vmul.f32 %v408, %v1213
      %v1863 = vmul.f32 %v409, %v1198
      %v1864 = vmul.f32 %v410, %v1214
      %v1865 = vmul.f32 %v411, %v1199
      %v1866 = vmul.f32 %v412, %v1215
      %v1867 = vmul.f32 %v413, %v1200
      %v1868 = vmul.f32 %v414, %v1216
      %v1869 = vmul.f32 %v415, %v1201
      %v1870 = vmul.f32 %v416, %v1217
      %v1871 = vsel %vm417, %v1855, 0.0
      %v1872 = vsel %vm417, %v1856, 0.0
      %v1873 = vadd.f32 %v1871, %v1872
      %v1874 = vsel %vm417, %v1857, 0.0
      %v1875 = vadd.f32 %v1873, %v1874
      %v1876 = vsel %vm417, %v1858, 0.0
      %v1877 = vadd.f32 %v1875, %v1876
      %v1878 = vsel %vm417, %v1859, 0.0
      %v1879 = vadd.f32 %v1877, %v1878
      %v1880 = vsel %vm417, %v1860, 0.0
      %v1881 = vadd.f32 %v1879, %v1880
      %v1882 = vsel %vm417, %v1861, 0.0
      %v1883 = vadd.f32 %v1881, %v1882
      %v1884 = vsel %vm417, %v1862, 0.0
      %v1885 = vadd.f32 %v1883, %v1884
      %v1886 = vsel %vm417, %v1863, 0.0
      %v1887 = vadd.f32 %v1885, %v1886
      %v1888 = vsel %vm417, %v1864, 0.0
      %v1889 = vadd.f32 %v1887, %v1888
      %v1890 = vsel %vm417, %v1865, 0.0
      %v1891 = vadd.f32 %v1889, %v1890
      %v1892 = vsel %vm417, %v1866, 0.0
      %v1893 = vadd.f32 %v1891, %v1892
      %v1894 = vsel %vm417, %v1867, 0.0
      %v1895 = vadd.f32 %v1893, %v1894
      %v1896 = vsel %vm417, %v1868, 0.0
      %v1897 = vadd.f32 %v1895, %v1896
      %v1898 = vsel %vm417, %v1869, 0.0
      %v1899 = vadd.f32 %v1897, %v1898
      %v1900 = vsel %vm417, %v1870, 0.0
      %v1901 = vadd.f32 %v1899, %v1900
      %1902 = vadd.xlane.f32.xlu0 %v1901
      %v1903 = vpop.xlane.xlu0 %1902
      %v1904 = vsub.f32 %v1854, %v1903
      %v1905 = vlaneseq
      %v1906 = vand.u32 %v1905, 127
      %vm1907 = vcmp.eq.s32.totalorder %v1906, 0
      %v1908 = vsel %vm1907, %v987, 0.0
      %v1909 = vadd.f32 %v1908, 0.0
      %vm1910 = vcmp.eq.s32.totalorder %v1906, 1
      %v1911 = vsel %vm1910, %v1045, 0.0
      %v1912 = vadd.f32 %v1909, %v1911
      %vm1913 = vcmp.eq.s32.totalorder %v1906, 2
      %v1914 = vsel %vm1913, %v1046, 0.0
      %v1915 = vadd.f32 %v1912, %v1914
      %vm1916 = vcmp.eq.s32.totalorder %v1906, 3
      %v1917 = vsel %vm1916, %v1193, 0.0
      %v1918 = vadd.f32 %v1915, %v1917
      %vm1919 = vcmp.eq.s32.totalorder %v1906, 4
      %v1920 = vsel %vm1919, %v1698, 0.0
      %v1921 = vadd.f32 %v1918, %v1920
      %vm1922 = vcmp.eq.s32.totalorder %v1906, 5
      %v1923 = vsel %vm1922, %v1756, 0.0
      %v1924 = vadd.f32 %v1921, %v1923
      %vm1925 = vcmp.eq.s32.totalorder %v1906, 6
      %v1926 = vsel %vm1925, %v1757, 0.0
      %v1927 = vadd.f32 %v1924, %v1926
      %vm1928 = vcmp.eq.s32.totalorder %v1906, 7
      %v1929 = vsel %vm1928, %v1904, 0.0
      %v1930 = vadd.f32 %v1927, %v1929
      %v1931 = vld [vmem:[#allocation2] sm:$0xf]
      %v1932 = vadd.f32 %v1931, %v1930
      %1933 = vst [vmem:[#allocation2] sm:$0xf] %v1932
      %p1934 = scmp.eq.s32.totalorder %s20, 1
      %p1935 = pnand %p1934, %p295
      %p1936 = pneg %p1935
      // Predicated region
      $region37: #{loss_forward.1} parent=31 // pred_check
        _
      $region38: #{loss_forward.1} parent=31 // pred_check_branch
        %1938 = sbr.rel (%p1935) target = $region40
      $region39: #{loss_forward.1} parent=31 // pred_region
        %v1939 = vld [vmem:[#allocation2] sm:$0xf]
        %1940 = vst [vmem:[%s293] sm:$0xf] %v1939
      $region40: #{loss_forward.1} parent=31 // pred_fallthru
        _
      %p1941 = scmp.lt.s32.totalorder %s19, 0
      %s1942 = scalar_select %p1941, %s19, 0
      %s1943 = smul.addr %s1942, 4
      %s1944 = scalar_lea.vmem %s3, %s1943
      // Predicated region
      $region41: #{loss_forward.1} parent=31 // pred_check
        %p1945 = pneg %p141
      $region42: #{loss_forward.1} parent=31 // pred_check_branch
        %1947 = sbr.rel (%p1945) target = $region44
      $region43: #{loss_forward.1} parent=31 // pred_region
        _
      $region44: #{loss_forward.1} parent=31 // pred_fallthru
        _
      // Predicated region
      $region45: #{loss_forward.1} parent=31 // pred_check
        %p1948 = pneg %p141
      $region46: #{loss_forward.1} parent=31 // pred_check_branch
        %1950 = sbr.rel (%p1948) target = $region48
      $region47: #{loss_forward.1} parent=31 // pred_region
        %p1951 = scmp.lt.s32.totalorder %s19, 0
        %s1952 = scalar_select %p1951, %s19, 0
        %s1953 = smul.addr %s1952, 4
        %s1954 = scalar_lea.vmem %s3, %s1953
      $region48: #{loss_forward.1} parent=31 // pred_fallthru
        _
    $region32: #{loss_forward.1} parent=5 // pred_fallthru
      _
    %p1955 = scmp.le.s32.totalorder 2, %s9
    // Predicated region
    $region49: #{loss_forward.1} parent=5 // pred_check
      %p1956 = pneg %p1955
    $region50: #{loss_forward.1} parent=5 // pred_check_branch
      %1958 = sbr.rel (%p1956) target = $region52
    $region51: #{loss_forward.1} parent=5 // pred_region
      %s1959 = ssub.s32 %s9, 2
    $region52: #{loss_forward.1} parent=5 // pred_fallthru
      _
  $region6: #{loss_forward.1} parent=0 // loop_footer
    %s13 = sadd.s32 1, %s9
  $region7: #{loss_forward.1} parent=0 // loop_footer_branch
    %8 = sbr.rel target = $region3
  $region8: #{loss_forward.1} parent=0 // loop_exit
    _

</llo_original>
